<compile_context>
chip_gen: v6e
topology: v6e:2x2x1
jax: 0.10.0
libtpu: 0.0.40
codegen_flags: <defaults>
</compile_context>

<pallas_src>
import jax
import jax.numpy as jnp
import numpy as np
from jax.experimental import pallas as pl
from jax.experimental.pallas import tpu as pltpu


def _round_up(x, m):
    return (x + m - 1) // m * m


# ----------------------------------------------------------------------------
# Fused RNN kernel: in-kernel embedding gather + stacked RNNCell unroll over
# time + hoisted layer-0 input projection + batched output projection.
# ----------------------------------------------------------------------------
def _make_rnn_kernel(num_layers, seq_len, batch, batch_pad, in_sizes, hidden,
                     vocab_pad):
    L, T, B, Bp, H, Vp = num_layers, seq_len, batch, batch_pad, hidden, vocab_pad
    assert H % 8 == 0, "hidden size must be sublane (8) aligned"
    assert Vp % 128 == 0, "padded vocab must be lane (128) aligned"
    assert all(s % 8 == 0 for s in in_sizes), \
        "cell input sizes must be sublane (8) aligned for the W[:in]/W[in:] split"

    def kernel(*refs):
        tok_ref = refs[0]                  # SMEM [B, T] int32
        emb_tbl_ref = refs[1]              # VMEM [V, E]  f32
        init_ref = refs[2]                 # VMEM [L, B, H] f32
        wb_refs = refs[3:3 + 2 * L]        # (W_j [in_j+H, H], b_j [1, H]) * L
        w_out_ref = refs[3 + 2 * L]        # [H, Vp]
        b_out_ref = refs[4 + 2 * L]        # [1, Vp]
        logits_ref = refs[5 + 2 * L]       # out [T*Bp, Vp]
        state_ref = refs[6 + 2 * L]        # out [L, Bp, H]
        emb_slab_ref = refs[7 + 2 * L]     # scratch [T*Bp, E]

        E = in_sizes[0]

        # ---- In-kernel embedding gather into a time-major, batch-padded slab.
        emb_slab_ref[...] = jnp.zeros((T * Bp, E), jnp.float32)
        for t in range(T):
            for b in range(B):
                tok = tok_ref[b, t]                                   # SMEM scalar
                emb_slab_ref[pl.ds(t * Bp + b, 1), :] = \
                    emb_tbl_ref[pl.ds(tok, 1), :]

        # ---- Weight prep: load, split cat-weight, cast to bf16 ONCE. ----
        w_x, w_h, bias_raw = [], [], []
        for j in range(L):
            w_full = wb_refs[2 * j][...]                              # [in_j+H, H]
            in_j = in_sizes[j]
            w_x.append(w_full[:in_j, :].astype(jnp.bfloat16))
            w_h.append(w_full[in_j:, :].astype(jnp.bfloat16))
            bias_raw.append(wb_refs[2 * j + 1][...])                  # [1, H] f32
        # Hoisted per-step bias broadcasts (layer 0 bias folds into pre_x0).
        bias_bcast = [jnp.broadcast_to(bias_raw[j], (Bp, H)) for j in range(1, L)]

        # ---- Hoisted layer-0 input projection (one batched matmul + bias). ----
        pre_x0 = (jnp.dot(emb_slab_ref[...].astype(jnp.bfloat16), w_x[0],
                          preferred_element_type=jnp.float32)
                  + bias_raw[0])                                      # [T*Bp, H]

        # ---- Init hidden states (batch pad done here, staged via output ref).
        state_ref[...] = jnp.zeros((L, Bp, H), jnp.float32)
        for j in range(L):
            state_ref[j, 0:B, :] = init_ref[j]
        s = [state_ref[j] for j in range(L)]          # [Bp, H] f32, live in vregs

        # ---- Time recurrence, fully unrolled; states & outputs stay in vregs.
        hs_steps = []
        for t in range(T):
            # Layer 0: recurrent matmul only (input projection already hoisted).
            pre0 = (pre_x0[t * Bp:(t + 1) * Bp, :]
                    + jnp.dot(s[0].astype(jnp.bfloat16), w_h[0],
                              preferred_element_type=jnp.float32))
            h = jnp.tanh(pre0)
            s[0] = h
            x = h
            # Upper layers: cat(x, s) @ W == x @ W[:H] + s @ W[H:]  (exact split).
            for j in range(1, L):
                pre = (jnp.dot(x.astype(jnp.bfloat16), w_x[j],
                               preferred_element_type=jnp.float32)
                       + jnp.dot(s[j].astype(jnp.bfloat16), w_h[j],
                                 preferred_element_type=jnp.float32)
                       + bias_bcast[j - 1])
                h = jnp.tanh(pre)
                s[j] = h
                x = h
            hs_steps.append(x)

        # Final state written once after the loop.
        for j in range(L):
            state_ref[j] = s[j]

        # ---- Output projection batched over all T*Bp rows: one lane-dense store.
        hs = jnp.concatenate(hs_steps, axis=0)                        # [T*Bp, H]
        logits_ref[...] = (
            jnp.dot(hs.astype(jnp.bfloat16), w_out_ref[...].astype(jnp.bfloat16),
                    preferred_element_type=jnp.float32)
            + b_out_ref[...])

    return kernel


# ----------------------------------------------------------------------------
# Wrapper: RNN.forward(xTokens, initial_hidden_state, outputLayer, Embedding,
#                      is_train=True)
# ----------------------------------------------------------------------------
@jax.jit
def rnn_forward(xTokens, initial_hidden_state, embedding, cell_ws, cell_bs,
                w_out, b_out):
    """cell_ws[j]: [in_j + H, H] (PyTorch RNNCell.weight used as-is);
    w_out: [H, V] (transpose of nn.Linear.weight), b_out: [1, V].
    Returns (logits [B, T, V], final_state [L, B, H])."""
    B, T = xTokens.shape
    L, _, H = initial_hidden_state.shape
    V, E = embedding.shape

    Bp = _round_up(max(B, 8), 8)     # full f32 sublanes inside the kernel
    Vp = _round_up(V, 128)           # lane-dense logits stores

    # Tiny parameter-prep pads (fused under jit); all activation-path glue
    # (embedding gather, time-major arrangement, batch pad) is in the kernel.
    w_out_p = jnp.pad(w_out, ((0, 0), (0, Vp - V)))
    b_out_p = jnp.pad(b_out, ((0, 0), (0, Vp - V)))

    in_sizes = tuple(int(w.shape[0]) - H for w in cell_ws)
    kernel = _make_rnn_kernel(L, T, B, Bp, in_sizes, H, Vp)

    args = [xTokens.astype(jnp.int32), embedding, initial_hidden_state]
    for W, b in zip(cell_ws, cell_bs):
        args += [W, b]
    args += [w_out_p, b_out_p]

    smem = pl.BlockSpec(memory_space=pltpu.MemorySpace.SMEM)
    vmem = pl.BlockSpec(memory_space=pltpu.MemorySpace.VMEM)
    in_specs = [smem] + [vmem] * (len(args) - 1)

    # No grid: every operand is a whole-array VMEM/SMEM resident, so the gather,
    # the recurrence and the output projection run in ONE kernel invocation.
    logits_flat, final_state_p = pl.pallas_call(
        kernel,
        out_shape=[jax.ShapeDtypeStruct((T * Bp, Vp), jnp.float32),
                   jax.ShapeDtypeStruct((L, Bp, H), jnp.float32)],
        in_specs=in_specs,
        scratch_shapes=[pltpu.VMEM((T * Bp, E), jnp.float32)],
    )(*args)

    # The [T, Bp, Vp] reshape is free; slice + batch-major transpose fuse under jit.
    logits = jnp.transpose(logits_flat.reshape(T, Bp, Vp)[:, :B, :V], (1, 0, 2))
    final_state = final_state_p[:, :B, :]
    return logits, final_state


# ----------------------------------------------------------------------------
# Pure-numpy reference matching the PyTorch RNN.forward (is_train=True).
# ----------------------------------------------------------------------------
def reference_forward(embedding, cell_ws, cell_bs, w_out, b_out, tokens,
                      init_state):
    L = init_state.shape[0]
    states = [np.array(init_state[j]) for j in range(L)]
    emb = embedding[tokens]                            # [B, T, E]
    T = tokens.shape[1]
    logits_list = []
    for t in range(T):
        x = emb[:, t, :]
        for j in range(L):
            cat = np.concatenate([x, states[j]], axis=1)
            h = np.tanh(cat @ cell_ws[j] + cell_bs[j])
            states[j] = h
            x = h
        logits_list.append(x @ w_out + b_out)
    logits = np.stack(logits_list, axis=1)             # [B, T, V]
    final_state = np.stack(states, axis=0)             # [L, B, H]
    return logits, final_state


# ----------------------------------------------------------------------------
# main
# ----------------------------------------------------------------------------
if __name__ == "__main__":
    V, E, H, L = 50, 32, 32, 2      # vocab, embedding, hidden, rnn layers
    B, T = 2, 8                     # batch, truncated backprop length

    key = jax.random.PRNGKey(0)
    keys = jax.random.split(key, 6 + L)

    # Parameters (shapes follow RNNCell / nn.Linear / nn.Embedding __init__).
    embedding = jax.random.normal(keys[0], (V, E), jnp.float32) * 0.1
    w_out = jax.random.normal(keys[1], (H, V), jnp.float32) / np.sqrt(H)
    b_out = jnp.zeros((1, V), jnp.float32)

    cell_w, cell_b = [], []
    for j in range(L):
        in_j = E if j == 0 else H
        n = in_j + H
        cell_w.append(jax.random.normal(keys[2 + j], (n, H), jnp.float32)
                      / np.sqrt(n))
        cell_b.append(jnp.zeros((1, H), jnp.float32))

    # Inputs to RNN.forward.
    xTokens = jax.random.randint(keys[2 + L], (B, T), 0, V, jnp.int32)
    initial_hidden_state = jax.random.normal(
        keys[3 + L], (L, B, H), jnp.float32) * 0.5

    logits, final_state = rnn_forward(
        xTokens, initial_hidden_state, embedding, cell_w, cell_b, w_out, b_out)
    logits = jax.block_until_ready(logits)
    final_state = jax.block_until_ready(final_state)

    # Correctness check vs numpy reference (bf16 MXU operands => loose-ish tol).
    ref_logits, ref_state = reference_forward(
        np.asarray(embedding),
        [np.asarray(w) for w in cell_w], [np.asarray(b) for b in cell_b],
        np.asarray(w_out), np.asarray(b_out),
        np.asarray(xTokens), np.asarray(initial_hidden_state))

    np.testing.assert_allclose(np.asarray(logits), ref_logits,
                               rtol=2e-2, atol=2e-2)
    np.testing.assert_allclose(np.asarray(final_state), ref_state,
                               rtol=2e-2, atol=2e-2)

    assert logits.shape == (B, T, V)
    assert final_state.shape == (L, B, H)
    print("KERNEL_OK")
</pallas_src>

<mosaic_0001>
module attributes {stable_mosaic.version = 11 : i64} {
  func.func @kernel(%arg0: memref<2x8xi32, #tpu.memory_space<smem>>, %arg1: memref<50x32xf32, #tpu.memory_space<vmem>>, %arg2: memref<2x2x32xf32, #tpu.memory_space<vmem>>, %arg3: memref<64x32xf32, #tpu.memory_space<vmem>>, %arg4: memref<1x32xf32, #tpu.memory_space<vmem>>, %arg5: memref<64x32xf32, #tpu.memory_space<vmem>>, %arg6: memref<1x32xf32, #tpu.memory_space<vmem>>, %arg7: memref<32x128xf32, #tpu.memory_space<vmem>>, %arg8: memref<1x128xf32, #tpu.memory_space<vmem>>, %arg9: memref<64x128xf32, #tpu.memory_space<vmem>>, %arg10: memref<2x8x32xf32, #tpu.memory_space<vmem>>, %arg11: memref<64x32xf32, #tpu.memory_space<vmem>>) attributes {dimension_semantics = [], scalar_prefetch = 0 : i64, scratch_operands = 1 : i64, tpu.core_type = #tpu.core_type<tc>} {
    %cst = arith.constant 0.000000e+00 : f32
    %0 = vector.broadcast %cst : f32 to vector<64x32xf32>
    %c0 = arith.constant 0 : index
    %c0_0 = arith.constant 0 : index
    %1 = vector.load %arg11[%c0, %c0_0] : memref<64x32xf32, #tpu.memory_space<vmem>>, vector<64x32xf32>
    tpu.vector_store %arg11[%c0, %c0_0], %0 {strides = array<i32>} : memref<64x32xf32, #tpu.memory_space<vmem>>, vector<64x32xf32>,
    %c0_1 = arith.constant 0 : index
    %c0_2 = arith.constant 0 : index
    %2 = memref.load %arg0[%c0_1, %c0_2] : memref<2x8xi32, #tpu.memory_space<smem>>
    %3 = arith.index_cast %2 : i32 to index
    %c0_3 = arith.constant 0 : index
    %4 = vector.load %arg1[%3, %c0_3] : memref<50x32xf32, #tpu.memory_space<vmem>>, vector<1x32xf32>
    %c0_4 = arith.constant 0 : index
    %c0_5 = arith.constant 0 : index
    %5 = vector.load %arg11[%c0_4, %c0_5] : memref<64x32xf32, #tpu.memory_space<vmem>>, vector<1x32xf32>
    tpu.vector_store %arg11[%c0_4, %c0_5], %4 {strides = array<i32>} : memref<64x32xf32, #tpu.memory_space<vmem>>, vector<1x32xf32>,
    %c1 = arith.constant 1 : index
    %c0_6 = arith.constant 0 : index
    %6 = memref.load %arg0[%c1, %c0_6] : memref<2x8xi32, #tpu.memory_space<smem>>
    %7 = arith.index_cast %6 : i32 to index
    %c0_7 = arith.constant 0 : index
    %8 = vector.load %arg1[%7, %c0_7] : memref<50x32xf32, #tpu.memory_space<vmem>>, vector<1x32xf32>
    %c1_8 = arith.constant 1 : index
    %c0_9 = arith.constant 0 : index
    %9 = vector.load %arg11[%c1_8, %c0_9] : memref<64x32xf32, #tpu.memory_space<vmem>>, vector<1x32xf32>
    tpu.vector_store %arg11[%c1_8, %c0_9], %8 {strides = array<i32>} : memref<64x32xf32, #tpu.memory_space<vmem>>, vector<1x32xf32>,
    %c0_10 = arith.constant 0 : index
    %c1_11 = arith.constant 1 : index
    %10 = memref.load %arg0[%c0_10, %c1_11] : memref<2x8xi32, #tpu.memory_space<smem>>
    %11 = arith.index_cast %10 : i32 to index
    %c0_12 = arith.constant 0 : index
    %12 = vector.load %arg1[%11, %c0_12] : memref<50x32xf32, #tpu.memory_space<vmem>>, vector<1x32xf32>
    %c8 = arith.constant 8 : index
    %c0_13 = arith.constant 0 : index
    %13 = vector.load %arg11[%c8, %c0_13] : memref<64x32xf32, #tpu.memory_space<vmem>>, vector<1x32xf32>
    tpu.vector_store %arg11[%c8, %c0_13], %12 {strides = array<i32>} : memref<64x32xf32, #tpu.memory_space<vmem>>, vector<1x32xf32>,
    %c1_14 = arith.constant 1 : index
    %c1_15 = arith.constant 1 : index
    %14 = memref.load %arg0[%c1_14, %c1_15] : memref<2x8xi32, #tpu.memory_space<smem>>
    %15 = arith.index_cast %14 : i32 to index
    %c0_16 = arith.constant 0 : index
    %16 = vector.load %arg1[%15, %c0_16] : memref<50x32xf32, #tpu.memory_space<vmem>>, vector<1x32xf32>
    %c9 = arith.constant 9 : index
    %c0_17 = arith.constant 0 : index
    %17 = vector.load %arg11[%c9, %c0_17] : memref<64x32xf32, #tpu.memory_space<vmem>>, vector<1x32xf32>
    tpu.vector_store %arg11[%c9, %c0_17], %16 {strides = array<i32>} : memref<64x32xf32, #tpu.memory_space<vmem>>, vector<1x32xf32>,
    %c0_18 = arith.constant 0 : index
    %c2 = arith.constant 2 : index
    %18 = memref.load %arg0[%c0_18, %c2] : memref<2x8xi32, #tpu.memory_space<smem>>
    %19 = arith.index_cast %18 : i32 to index
    %c0_19 = arith.constant 0 : index
    %20 = vector.load %arg1[%19, %c0_19] : memref<50x32xf32, #tpu.memory_space<vmem>>, vector<1x32xf32>
    %c16 = arith.constant 16 : index
    %c0_20 = arith.constant 0 : index
    %21 = vector.load %arg11[%c16, %c0_20] : memref<64x32xf32, #tpu.memory_space<vmem>>, vector<1x32xf32>
    tpu.vector_store %arg11[%c16, %c0_20], %20 {strides = array<i32>} : memref<64x32xf32, #tpu.memory_space<vmem>>, vector<1x32xf32>,
    %c1_21 = arith.constant 1 : index
    %c2_22 = arith.constant 2 : index
    %22 = memref.load %arg0[%c1_21, %c2_22] : memref<2x8xi32, #tpu.memory_space<smem>>
    %23 = arith.index_cast %22 : i32 to index
    %c0_23 = arith.constant 0 : index
    %24 = vector.load %arg1[%23, %c0_23] : memref<50x32xf32, #tpu.memory_space<vmem>>, vector<1x32xf32>
    %c17 = arith.constant 17 : index
    %c0_24 = arith.constant 0 : index
    %25 = vector.load %arg11[%c17, %c0_24] : memref<64x32xf32, #tpu.memory_space<vmem>>, vector<1x32xf32>
    tpu.vector_store %arg11[%c17, %c0_24], %24 {strides = array<i32>} : memref<64x32xf32, #tpu.memory_space<vmem>>, vector<1x32xf32>,
    %c0_25 = arith.constant 0 : index
    %c3 = arith.constant 3 : index
    %26 = memref.load %arg0[%c0_25, %c3] : memref<2x8xi32, #tpu.memory_space<smem>>
    %27 = arith.index_cast %26 : i32 to index
    %c0_26 = arith.constant 0 : index
    %28 = vector.load %arg1[%27, %c0_26] : memref<50x32xf32, #tpu.memory_space<vmem>>, vector<1x32xf32>
    %c24 = arith.constant 24 : index
    %c0_27 = arith.constant 0 : index
    %29 = vector.load %arg11[%c24, %c0_27] : memref<64x32xf32, #tpu.memory_space<vmem>>, vector<1x32xf32>
    tpu.vector_store %arg11[%c24, %c0_27], %28 {strides = array<i32>} : memref<64x32xf32, #tpu.memory_space<vmem>>, vector<1x32xf32>,
    %c1_28 = arith.constant 1 : index
    %c3_29 = arith.constant 3 : index
    %30 = memref.load %arg0[%c1_28, %c3_29] : memref<2x8xi32, #tpu.memory_space<smem>>
    %31 = arith.index_cast %30 : i32 to index
    %c0_30 = arith.constant 0 : index
    %32 = vector.load %arg1[%31, %c0_30] : memref<50x32xf32, #tpu.memory_space<vmem>>, vector<1x32xf32>
    %c25 = arith.constant 25 : index
    %c0_31 = arith.constant 0 : index
    %33 = vector.load %arg11[%c25, %c0_31] : memref<64x32xf32, #tpu.memory_space<vmem>>, vector<1x32xf32>
    tpu.vector_store %arg11[%c25, %c0_31], %32 {strides = array<i32>} : memref<64x32xf32, #tpu.memory_space<vmem>>, vector<1x32xf32>,
    %c0_32 = arith.constant 0 : index
    %c4 = arith.constant 4 : index
    %34 = memref.load %arg0[%c0_32, %c4] : memref<2x8xi32, #tpu.memory_space<smem>>
    %35 = arith.index_cast %34 : i32 to index
    %c0_33 = arith.constant 0 : index
    %36 = vector.load %arg1[%35, %c0_33] : memref<50x32xf32, #tpu.memory_space<vmem>>, vector<1x32xf32>
    %c32 = arith.constant 32 : index
    %c0_34 = arith.constant 0 : index
    %37 = vector.load %arg11[%c32, %c0_34] : memref<64x32xf32, #tpu.memory_space<vmem>>, vector<1x32xf32>
    tpu.vector_store %arg11[%c32, %c0_34], %36 {strides = array<i32>} : memref<64x32xf32, #tpu.memory_space<vmem>>, vector<1x32xf32>,
    %c1_35 = arith.constant 1 : index
    %c4_36 = arith.constant 4 : index
    %38 = memref.load %arg0[%c1_35, %c4_36] : memref<2x8xi32, #tpu.memory_space<smem>>
    %39 = arith.index_cast %38 : i32 to index
    %c0_37 = arith.constant 0 : index
    %40 = vector.load %arg1[%39, %c0_37] : memref<50x32xf32, #tpu.memory_space<vmem>>, vector<1x32xf32>
    %c33 = arith.constant 33 : index
    %c0_38 = arith.constant 0 : index
    %41 = vector.load %arg11[%c33, %c0_38] : memref<64x32xf32, #tpu.memory_space<vmem>>, vector<1x32xf32>
    tpu.vector_store %arg11[%c33, %c0_38], %40 {strides = array<i32>} : memref<64x32xf32, #tpu.memory_space<vmem>>, vector<1x32xf32>,
    %c0_39 = arith.constant 0 : index
    %c5 = arith.constant 5 : index
    %42 = memref.load %arg0[%c0_39, %c5] : memref<2x8xi32, #tpu.memory_space<smem>>
    %43 = arith.index_cast %42 : i32 to index
    %c0_40 = arith.constant 0 : index
    %44 = vector.load %arg1[%43, %c0_40] : memref<50x32xf32, #tpu.memory_space<vmem>>, vector<1x32xf32>
    %c40 = arith.constant 40 : index
    %c0_41 = arith.constant 0 : index
    %45 = vector.load %arg11[%c40, %c0_41] : memref<64x32xf32, #tpu.memory_space<vmem>>, vector<1x32xf32>
    tpu.vector_store %arg11[%c40, %c0_41], %44 {strides = array<i32>} : memref<64x32xf32, #tpu.memory_space<vmem>>, vector<1x32xf32>,
    %c1_42 = arith.constant 1 : index
    %c5_43 = arith.constant 5 : index
    %46 = memref.load %arg0[%c1_42, %c5_43] : memref<2x8xi32, #tpu.memory_space<smem>>
    %47 = arith.index_cast %46 : i32 to index
    %c0_44 = arith.constant 0 : index
    %48 = vector.load %arg1[%47, %c0_44] : memref<50x32xf32, #tpu.memory_space<vmem>>, vector<1x32xf32>
    %c41 = arith.constant 41 : index
    %c0_45 = arith.constant 0 : index
    %49 = vector.load %arg11[%c41, %c0_45] : memref<64x32xf32, #tpu.memory_space<vmem>>, vector<1x32xf32>
    tpu.vector_store %arg11[%c41, %c0_45], %48 {strides = array<i32>} : memref<64x32xf32, #tpu.memory_space<vmem>>, vector<1x32xf32>,
    %c0_46 = arith.constant 0 : index
    %c6 = arith.constant 6 : index
    %50 = memref.load %arg0[%c0_46, %c6] : memref<2x8xi32, #tpu.memory_space<smem>>
    %51 = arith.index_cast %50 : i32 to index
    %c0_47 = arith.constant 0 : index
    %52 = vector.load %arg1[%51, %c0_47] : memref<50x32xf32, #tpu.memory_space<vmem>>, vector<1x32xf32>
    %c48 = arith.constant 48 : index
    %c0_48 = arith.constant 0 : index
    %53 = vector.load %arg11[%c48, %c0_48] : memref<64x32xf32, #tpu.memory_space<vmem>>, vector<1x32xf32>
    tpu.vector_store %arg11[%c48, %c0_48], %52 {strides = array<i32>} : memref<64x32xf32, #tpu.memory_space<vmem>>, vector<1x32xf32>,
    %c1_49 = arith.constant 1 : index
    %c6_50 = arith.constant 6 : index
    %54 = memref.load %arg0[%c1_49, %c6_50] : memref<2x8xi32, #tpu.memory_space<smem>>
    %55 = arith.index_cast %54 : i32 to index
    %c0_51 = arith.constant 0 : index
    %56 = vector.load %arg1[%55, %c0_51] : memref<50x32xf32, #tpu.memory_space<vmem>>, vector<1x32xf32>
    %c49 = arith.constant 49 : index
    %c0_52 = arith.constant 0 : index
    %57 = vector.load %arg11[%c49, %c0_52] : memref<64x32xf32, #tpu.memory_space<vmem>>, vector<1x32xf32>
    tpu.vector_store %arg11[%c49, %c0_52], %56 {strides = array<i32>} : memref<64x32xf32, #tpu.memory_space<vmem>>, vector<1x32xf32>,
    %c0_53 = arith.constant 0 : index
    %c7 = arith.constant 7 : index
    %58 = memref.load %arg0[%c0_53, %c7] : memref<2x8xi32, #tpu.memory_space<smem>>
    %59 = arith.index_cast %58 : i32 to index
    %c0_54 = arith.constant 0 : index
    %60 = vector.load %arg1[%59, %c0_54] : memref<50x32xf32, #tpu.memory_space<vmem>>, vector<1x32xf32>
    %c56 = arith.constant 56 : index
    %c0_55 = arith.constant 0 : index
    %61 = vector.load %arg11[%c56, %c0_55] : memref<64x32xf32, #tpu.memory_space<vmem>>, vector<1x32xf32>
    tpu.vector_store %arg11[%c56, %c0_55], %60 {strides = array<i32>} : memref<64x32xf32, #tpu.memory_space<vmem>>, vector<1x32xf32>,
    %c1_56 = arith.constant 1 : index
    %c7_57 = arith.constant 7 : index
    %62 = memref.load %arg0[%c1_56, %c7_57] : memref<2x8xi32, #tpu.memory_space<smem>>
    %63 = arith.index_cast %62 : i32 to index
    %c0_58 = arith.constant 0 : index
    %64 = vector.load %arg1[%63, %c0_58] : memref<50x32xf32, #tpu.memory_space<vmem>>, vector<1x32xf32>
    %c57 = arith.constant 57 : index
    %c0_59 = arith.constant 0 : index
    %65 = vector.load %arg11[%c57, %c0_59] : memref<64x32xf32, #tpu.memory_space<vmem>>, vector<1x32xf32>
    tpu.vector_store %arg11[%c57, %c0_59], %64 {strides = array<i32>} : memref<64x32xf32, #tpu.memory_space<vmem>>, vector<1x32xf32>,
    %c0_60 = arith.constant 0 : index
    %c0_61 = arith.constant 0 : index
    %66 = vector.load %arg3[%c0_60, %c0_61] : memref<64x32xf32, #tpu.memory_space<vmem>>, vector<64x32xf32>
    %67 = vector.extract_strided_slice %66 {offsets = [0, 0], sizes = [32, 32], strides = [1, 1]} : vector<64x32xf32> to vector<32x32xf32>
    %68 = arith.truncf %67 : vector<32x32xf32> to vector<32x32xbf16>
    %69 = vector.extract_strided_slice %66 {offsets = [32, 0], sizes = [32, 32], strides = [1, 1]} : vector<64x32xf32> to vector<32x32xf32>
    %70 = arith.truncf %69 : vector<32x32xf32> to vector<32x32xbf16>
    %c0_62 = arith.constant 0 : index
    %c0_63 = arith.constant 0 : index
    %71 = vector.load %arg4[%c0_62, %c0_63] : memref<1x32xf32, #tpu.memory_space<vmem>>, vector<1x32xf32>
    %c0_64 = arith.constant 0 : index
    %c0_65 = arith.constant 0 : index
    %72 = vector.load %arg5[%c0_64, %c0_65] : memref<64x32xf32, #tpu.memory_space<vmem>>, vector<64x32xf32>
    %73 = vector.extract_strided_slice %72 {offsets = [0, 0], sizes = [32, 32], strides = [1, 1]} : vector<64x32xf32> to vector<32x32xf32>
    %74 = arith.truncf %73 : vector<32x32xf32> to vector<32x32xbf16>
    %75 = vector.extract_strided_slice %72 {offsets = [32, 0], sizes = [32, 32], strides = [1, 1]} : vector<64x32xf32> to vector<32x32xf32>
    %76 = arith.truncf %75 : vector<32x32xf32> to vector<32x32xbf16>
    %c0_66 = arith.constant 0 : index
    %c0_67 = arith.constant 0 : index
    %77 = vector.load %arg6[%c0_66, %c0_67] : memref<1x32xf32, #tpu.memory_space<vmem>>, vector<1x32xf32>
    %78 = vector.shape_cast %77 : vector<1x32xf32> to vector<1x32xf32>
    %79 = vector.broadcast %78 : vector<1x32xf32> to vector<8x32xf32>
    %c0_68 = arith.constant 0 : index
    %c0_69 = arith.constant 0 : index
    %80 = vector.load %arg11[%c0_68, %c0_69] : memref<64x32xf32, #tpu.memory_space<vmem>>, vector<64x32xf32>
    %81 = arith.truncf %80 : vector<64x32xf32> to vector<64x32xbf16>
    %cst_70 = arith.constant dense<0.000000e+00> : vector<64x32xf32>
    %82 = tpu.matmul %81, %68, %cst_70 {dimension_numbers = #tpu.dot_dimension_numbers<[1], [0], [0], [1], [0, 0, 1, 1], [], []>} : vector<64x32xbf16>, vector<32x32xbf16>, vector<64x32xf32> -> vector<64x32xf32>
    %83 = vector.broadcast %71 : vector<1x32xf32> to vector<64x32xf32>
    %84 = arith.addf %82, %83 : vector<64x32xf32>
    %cst_71 = arith.constant 0.000000e+00 : f32
    %85 = vector.broadcast %cst_71 : f32 to vector<2x8x32xf32>
    %c0_72 = arith.constant 0 : index
    %c0_73 = arith.constant 0 : index
    %c0_74 = arith.constant 0 : index
    %86 = vector.load %arg10[%c0_72, %c0_73, %c0_74] : memref<2x8x32xf32, #tpu.memory_space<vmem>>, vector<2x8x32xf32>
    tpu.vector_store %arg10[%c0_72, %c0_73, %c0_74], %85 {strides = array<i32>} : memref<2x8x32xf32, #tpu.memory_space<vmem>>, vector<2x8x32xf32>,
    %c0_75 = arith.constant 0 : index
    %c0_76 = arith.constant 0 : index
    %c0_77 = arith.constant 0 : index
    %87 = vector.load %arg2[%c0_75, %c0_76, %c0_77] : memref<2x2x32xf32, #tpu.memory_space<vmem>>, vector<1x2x32xf32>
    %88 = vector.shape_cast %87 : vector<1x2x32xf32> to vector<2x32xf32>
    %c0_78 = arith.constant 0 : index
    %c0_79 = arith.constant 0 : index
    %c0_80 = arith.constant 0 : index
    %89 = vector.load %arg10[%c0_78, %c0_79, %c0_80] : memref<2x8x32xf32, #tpu.memory_space<vmem>>, vector<1x2x32xf32>
    %90 = vector.shape_cast %89 : vector<1x2x32xf32> to vector<2x32xf32>
    %91 = vector.shape_cast %88 : vector<2x32xf32> to vector<1x2x32xf32>
    tpu.vector_store %arg10[%c0_78, %c0_79, %c0_80], %91 {strides = array<i32>} : memref<2x8x32xf32, #tpu.memory_space<vmem>>, vector<1x2x32xf32>,
    %c1_81 = arith.constant 1 : index
    %c0_82 = arith.constant 0 : index
    %c0_83 = arith.constant 0 : index
    %92 = vector.load %arg2[%c1_81, %c0_82, %c0_83] : memref<2x2x32xf32, #tpu.memory_space<vmem>>, vector<1x2x32xf32>
    %93 = vector.shape_cast %92 : vector<1x2x32xf32> to vector<2x32xf32>
    %c1_84 = arith.constant 1 : index
    %c0_85 = arith.constant 0 : index
    %c0_86 = arith.constant 0 : index
    %94 = vector.load %arg10[%c1_84, %c0_85, %c0_86] : memref<2x8x32xf32, #tpu.memory_space<vmem>>, vector<1x2x32xf32>
    %95 = vector.shape_cast %94 : vector<1x2x32xf32> to vector<2x32xf32>
    %96 = vector.shape_cast %93 : vector<2x32xf32> to vector<1x2x32xf32>
    tpu.vector_store %arg10[%c1_84, %c0_85, %c0_86], %96 {strides = array<i32>} : memref<2x8x32xf32, #tpu.memory_space<vmem>>, vector<1x2x32xf32>,
    %c0_87 = arith.constant 0 : index
    %c0_88 = arith.constant 0 : index
    %c0_89 = arith.constant 0 : index
    %97 = vector.load %arg10[%c0_87, %c0_88, %c0_89] : memref<2x8x32xf32, #tpu.memory_space<vmem>>, vector<1x8x32xf32>
    %98 = vector.shape_cast %97 : vector<1x8x32xf32> to vector<8x32xf32>
    %c1_90 = arith.constant 1 : index
    %c0_91 = arith.constant 0 : index
    %c0_92 = arith.constant 0 : index
    %99 = vector.load %arg10[%c1_90, %c0_91, %c0_92] : memref<2x8x32xf32, #tpu.memory_space<vmem>>, vector<1x8x32xf32>
    %100 = vector.shape_cast %99 : vector<1x8x32xf32> to vector<8x32xf32>
    %101 = vector.extract_strided_slice %84 {offsets = [0, 0], sizes = [8, 32], strides = [1, 1]} : vector<64x32xf32> to vector<8x32xf32>
    %102 = arith.truncf %98 : vector<8x32xf32> to vector<8x32xbf16>
    %cst_93 = arith.constant dense<0.000000e+00> : vector<8x32xf32>
    %103 = tpu.matmul %102, %70, %cst_93 {dimension_numbers = #tpu.dot_dimension_numbers<[1], [0], [0], [1], [0, 0, 1, 1], [], []>} : vector<8x32xbf16>, vector<32x32xbf16>, vector<8x32xf32> -> vector<8x32xf32>
    %104 = arith.addf %101, %103 : vector<8x32xf32>
    %105 = math.tanh %104 : vector<8x32xf32>
    %106 = arith.truncf %105 : vector<8x32xf32> to vector<8x32xbf16>
    %cst_94 = arith.constant dense<0.000000e+00> : vector<8x32xf32>
    %107 = tpu.matmul %106, %74, %cst_94 {dimension_numbers = #tpu.dot_dimension_numbers<[1], [0], [0], [1], [0, 0, 1, 1], [], []>} : vector<8x32xbf16>, vector<32x32xbf16>, vector<8x32xf32> -> vector<8x32xf32>
    %108 = arith.truncf %100 : vector<8x32xf32> to vector<8x32xbf16>
    %cst_95 = arith.constant dense<0.000000e+00> : vector<8x32xf32>
    %109 = tpu.matmul %108, %76, %cst_95 {dimension_numbers = #tpu.dot_dimension_numbers<[1], [0], [0], [1], [0, 0, 1, 1], [], []>} : vector<8x32xbf16>, vector<32x32xbf16>, vector<8x32xf32> -> vector<8x32xf32>
    %110 = arith.addf %107, %109 : vector<8x32xf32>
    %111 = arith.addf %110, %79 : vector<8x32xf32>
    %112 = math.tanh %111 : vector<8x32xf32>
    %113 = vector.extract_strided_slice %84 {offsets = [8, 0], sizes = [8, 32], strides = [1, 1]} : vector<64x32xf32> to vector<8x32xf32>
    %114 = arith.truncf %105 : vector<8x32xf32> to vector<8x32xbf16>
    %cst_96 = arith.constant dense<0.000000e+00> : vector<8x32xf32>
    %115 = tpu.matmul %114, %70, %cst_96 {dimension_numbers = #tpu.dot_dimension_numbers<[1], [0], [0], [1], [0, 0, 1, 1], [], []>} : vector<8x32xbf16>, vector<32x32xbf16>, vector<8x32xf32> -> vector<8x32xf32>
    %116 = arith.addf %113, %115 : vector<8x32xf32>
    %117 = math.tanh %116 : vector<8x32xf32>
    %118 = arith.truncf %117 : vector<8x32xf32> to vector<8x32xbf16>
    %cst_97 = arith.constant dense<0.000000e+00> : vector<8x32xf32>
    %119 = tpu.matmul %118, %74, %cst_97 {dimension_numbers = #tpu.dot_dimension_numbers<[1], [0], [0], [1], [0, 0, 1, 1], [], []>} : vector<8x32xbf16>, vector<32x32xbf16>, vector<8x32xf32> -> vector<8x32xf32>
    %120 = arith.truncf %112 : vector<8x32xf32> to vector<8x32xbf16>
    %cst_98 = arith.constant dense<0.000000e+00> : vector<8x32xf32>
    %121 = tpu.matmul %120, %76, %cst_98 {dimension_numbers = #tpu.dot_dimension_numbers<[1], [0], [0], [1], [0, 0, 1, 1], [], []>} : vector<8x32xbf16>, vector<32x32xbf16>, vector<8x32xf32> -> vector<8x32xf32>
    %122 = arith.addf %119, %121 : vector<8x32xf32>
    %123 = arith.addf %122, %79 : vector<8x32xf32>
    %124 = math.tanh %123 : vector<8x32xf32>
    %125 = vector.extract_strided_slice %84 {offsets = [16, 0], sizes = [8, 32], strides = [1, 1]} : vector<64x32xf32> to vector<8x32xf32>
    %126 = arith.truncf %117 : vector<8x32xf32> to vector<8x32xbf16>
    %cst_99 = arith.constant dense<0.000000e+00> : vector<8x32xf32>
    %127 = tpu.matmul %126, %70, %cst_99 {dimension_numbers = #tpu.dot_dimension_numbers<[1], [0], [0], [1], [0, 0, 1, 1], [], []>} : vector<8x32xbf16>, vector<32x32xbf16>, vector<8x32xf32> -> vector<8x32xf32>
    %128 = arith.addf %125, %127 : vector<8x32xf32>
    %129 = math.tanh %128 : vector<8x32xf32>
    %130 = arith.truncf %129 : vector<8x32xf32> to vector<8x32xbf16>
    %cst_100 = arith.constant dense<0.000000e+00> : vector<8x32xf32>
    %131 = tpu.matmul %130, %74, %cst_100 {dimension_numbers = #tpu.dot_dimension_numbers<[1], [0], [0], [1], [0, 0, 1, 1], [], []>} : vector<8x32xbf16>, vector<32x32xbf16>, vector<8x32xf32> -> vector<8x32xf32>
    %132 = arith.truncf %124 : vector<8x32xf32> to vector<8x32xbf16>
    %cst_101 = arith.constant dense<0.000000e+00> : vector<8x32xf32>
    %133 = tpu.matmul %132, %76, %cst_101 {dimension_numbers = #tpu.dot_dimension_numbers<[1], [0], [0], [1], [0, 0, 1, 1], [], []>} : vector<8x32xbf16>, vector<32x32xbf16>, vector<8x32xf32> -> vector<8x32xf32>
    %134 = arith.addf %131, %133 : vector<8x32xf32>
    %135 = arith.addf %134, %79 : vector<8x32xf32>
    %136 = math.tanh %135 : vector<8x32xf32>
    %137 = vector.extract_strided_slice %84 {offsets = [24, 0], sizes = [8, 32], strides = [1, 1]} : vector<64x32xf32> to vector<8x32xf32>
    %138 = arith.truncf %129 : vector<8x32xf32> to vector<8x32xbf16>
    %cst_102 = arith.constant dense<0.000000e+00> : vector<8x32xf32>
    %139 = tpu.matmul %138, %70, %cst_102 {dimension_numbers = #tpu.dot_dimension_numbers<[1], [0], [0], [1], [0, 0, 1, 1], [], []>} : vector<8x32xbf16>, vector<32x32xbf16>, vector<8x32xf32> -> vector<8x32xf32>
    %140 = arith.addf %137, %139 : vector<8x32xf32>
    %141 = math.tanh %140 : vector<8x32xf32>
    %142 = arith.truncf %141 : vector<8x32xf32> to vector<8x32xbf16>
    %cst_103 = arith.constant dense<0.000000e+00> : vector<8x32xf32>
    %143 = tpu.matmul %142, %74, %cst_103 {dimension_numbers = #tpu.dot_dimension_numbers<[1], [0], [0], [1], [0, 0, 1, 1], [], []>} : vector<8x32xbf16>, vector<32x32xbf16>, vector<8x32xf32> -> vector<8x32xf32>
    %144 = arith.truncf %136 : vector<8x32xf32> to vector<8x32xbf16>
    %cst_104 = arith.constant dense<0.000000e+00> : vector<8x32xf32>
    %145 = tpu.matmul %144, %76, %cst_104 {dimension_numbers = #tpu.dot_dimension_numbers<[1], [0], [0], [1], [0, 0, 1, 1], [], []>} : vector<8x32xbf16>, vector<32x32xbf16>, vector<8x32xf32> -> vector<8x32xf32>
    %146 = arith.addf %143, %145 : vector<8x32xf32>
    %147 = arith.addf %146, %79 : vector<8x32xf32>
    %148 = math.tanh %147 : vector<8x32xf32>
    %149 = vector.extract_strided_slice %84 {offsets = [32, 0], sizes = [8, 32], strides = [1, 1]} : vector<64x32xf32> to vector<8x32xf32>
    %150 = arith.truncf %141 : vector<8x32xf32> to vector<8x32xbf16>
    %cst_105 = arith.constant dense<0.000000e+00> : vector<8x32xf32>
    %151 = tpu.matmul %150, %70, %cst_105 {dimension_numbers = #tpu.dot_dimension_numbers<[1], [0], [0], [1], [0, 0, 1, 1], [], []>} : vector<8x32xbf16>, vector<32x32xbf16>, vector<8x32xf32> -> vector<8x32xf32>
    %152 = arith.addf %149, %151 : vector<8x32xf32>
    %153 = math.tanh %152 : vector<8x32xf32>
    %154 = arith.truncf %153 : vector<8x32xf32> to vector<8x32xbf16>
    %cst_106 = arith.constant dense<0.000000e+00> : vector<8x32xf32>
    %155 = tpu.matmul %154, %74, %cst_106 {dimension_numbers = #tpu.dot_dimension_numbers<[1], [0], [0], [1], [0, 0, 1, 1], [], []>} : vector<8x32xbf16>, vector<32x32xbf16>, vector<8x32xf32> -> vector<8x32xf32>
    %156 = arith.truncf %148 : vector<8x32xf32> to vector<8x32xbf16>
    %cst_107 = arith.constant dense<0.000000e+00> : vector<8x32xf32>
    %157 = tpu.matmul %156, %76, %cst_107 {dimension_numbers = #tpu.dot_dimension_numbers<[1], [0], [0], [1], [0, 0, 1, 1], [], []>} : vector<8x32xbf16>, vector<32x32xbf16>, vector<8x32xf32> -> vector<8x32xf32>
    %158 = arith.addf %155, %157 : vector<8x32xf32>
    %159 = arith.addf %158, %79 : vector<8x32xf32>
    %160 = math.tanh %159 : vector<8x32xf32>
    %161 = vector.extract_strided_slice %84 {offsets = [40, 0], sizes = [8, 32], strides = [1, 1]} : vector<64x32xf32> to vector<8x32xf32>
    %162 = arith.truncf %153 : vector<8x32xf32> to vector<8x32xbf16>
    %cst_108 = arith.constant dense<0.000000e+00> : vector<8x32xf32>
    %163 = tpu.matmul %162, %70, %cst_108 {dimension_numbers = #tpu.dot_dimension_numbers<[1], [0], [0], [1], [0, 0, 1, 1], [], []>} : vector<8x32xbf16>, vector<32x32xbf16>, vector<8x32xf32> -> vector<8x32xf32>
    %164 = arith.addf %161, %163 : vector<8x32xf32>
    %165 = math.tanh %164 : vector<8x32xf32>
    %166 = arith.truncf %165 : vector<8x32xf32> to vector<8x32xbf16>
    %cst_109 = arith.constant dense<0.000000e+00> : vector<8x32xf32>
    %167 = tpu.matmul %166, %74, %cst_109 {dimension_numbers = #tpu.dot_dimension_numbers<[1], [0], [0], [1], [0, 0, 1, 1], [], []>} : vector<8x32xbf16>, vector<32x32xbf16>, vector<8x32xf32> -> vector<8x32xf32>
    %168 = arith.truncf %160 : vector<8x32xf32> to vector<8x32xbf16>
    %cst_110 = arith.constant dense<0.000000e+00> : vector<8x32xf32>
    %169 = tpu.matmul %168, %76, %cst_110 {dimension_numbers = #tpu.dot_dimension_numbers<[1], [0], [0], [1], [0, 0, 1, 1], [], []>} : vector<8x32xbf16>, vector<32x32xbf16>, vector<8x32xf32> -> vector<8x32xf32>
    %170 = arith.addf %167, %169 : vector<8x32xf32>
    %171 = arith.addf %170, %79 : vector<8x32xf32>
    %172 = math.tanh %171 : vector<8x32xf32>
    %173 = vector.extract_strided_slice %84 {offsets = [48, 0], sizes = [8, 32], strides = [1, 1]} : vector<64x32xf32> to vector<8x32xf32>
    %174 = arith.truncf %165 : vector<8x32xf32> to vector<8x32xbf16>
    %cst_111 = arith.constant dense<0.000000e+00> : vector<8x32xf32>
    %175 = tpu.matmul %174, %70, %cst_111 {dimension_numbers = #tpu.dot_dimension_numbers<[1], [0], [0], [1], [0, 0, 1, 1], [], []>} : vector<8x32xbf16>, vector<32x32xbf16>, vector<8x32xf32> -> vector<8x32xf32>
    %176 = arith.addf %173, %175 : vector<8x32xf32>
    %177 = math.tanh %176 : vector<8x32xf32>
    %178 = arith.truncf %177 : vector<8x32xf32> to vector<8x32xbf16>
    %cst_112 = arith.constant dense<0.000000e+00> : vector<8x32xf32>
    %179 = tpu.matmul %178, %74, %cst_112 {dimension_numbers = #tpu.dot_dimension_numbers<[1], [0], [0], [1], [0, 0, 1, 1], [], []>} : vector<8x32xbf16>, vector<32x32xbf16>, vector<8x32xf32> -> vector<8x32xf32>
    %180 = arith.truncf %172 : vector<8x32xf32> to vector<8x32xbf16>
    %cst_113 = arith.constant dense<0.000000e+00> : vector<8x32xf32>
    %181 = tpu.matmul %180, %76, %cst_113 {dimension_numbers = #tpu.dot_dimension_numbers<[1], [0], [0], [1], [0, 0, 1, 1], [], []>} : vector<8x32xbf16>, vector<32x32xbf16>, vector<8x32xf32> -> vector<8x32xf32>
    %182 = arith.addf %179, %181 : vector<8x32xf32>
    %183 = arith.addf %182, %79 : vector<8x32xf32>
    %184 = math.tanh %183 : vector<8x32xf32>
    %185 = vector.extract_strided_slice %84 {offsets = [56, 0], sizes = [8, 32], strides = [1, 1]} : vector<64x32xf32> to vector<8x32xf32>
    %186 = arith.truncf %177 : vector<8x32xf32> to vector<8x32xbf16>
    %cst_114 = arith.constant dense<0.000000e+00> : vector<8x32xf32>
    %187 = tpu.matmul %186, %70, %cst_114 {dimension_numbers = #tpu.dot_dimension_numbers<[1], [0], [0], [1], [0, 0, 1, 1], [], []>} : vector<8x32xbf16>, vector<32x32xbf16>, vector<8x32xf32> -> vector<8x32xf32>
    %188 = arith.addf %185, %187 : vector<8x32xf32>
    %189 = math.tanh %188 : vector<8x32xf32>
    %190 = arith.truncf %189 : vector<8x32xf32> to vector<8x32xbf16>
    %cst_115 = arith.constant dense<0.000000e+00> : vector<8x32xf32>
    %191 = tpu.matmul %190, %74, %cst_115 {dimension_numbers = #tpu.dot_dimension_numbers<[1], [0], [0], [1], [0, 0, 1, 1], [], []>} : vector<8x32xbf16>, vector<32x32xbf16>, vector<8x32xf32> -> vector<8x32xf32>
    %192 = arith.truncf %184 : vector<8x32xf32> to vector<8x32xbf16>
    %cst_116 = arith.constant dense<0.000000e+00> : vector<8x32xf32>
    %193 = tpu.matmul %192, %76, %cst_116 {dimension_numbers = #tpu.dot_dimension_numbers<[1], [0], [0], [1], [0, 0, 1, 1], [], []>} : vector<8x32xbf16>, vector<32x32xbf16>, vector<8x32xf32> -> vector<8x32xf32>
    %194 = arith.addf %191, %193 : vector<8x32xf32>
    %195 = arith.addf %194, %79 : vector<8x32xf32>
    %196 = math.tanh %195 : vector<8x32xf32>
    %c0_117 = arith.constant 0 : index
    %c0_118 = arith.constant 0 : index
    %c0_119 = arith.constant 0 : index
    %197 = vector.load %arg10[%c0_117, %c0_118, %c0_119] : memref<2x8x32xf32, #tpu.memory_space<vmem>>, vector<1x8x32xf32>
    %198 = vector.shape_cast %197 : vector<1x8x32xf32> to vector<8x32xf32>
    %199 = vector.shape_cast %189 : vector<8x32xf32> to vector<1x8x32xf32>
    tpu.vector_store %arg10[%c0_117, %c0_118, %c0_119], %199 {strides = array<i32>} : memref<2x8x32xf32, #tpu.memory_space<vmem>>, vector<1x8x32xf32>,
    %c1_120 = arith.constant 1 : index
    %c0_121 = arith.constant 0 : index
    %c0_122 = arith.constant 0 : index
    %200 = vector.load %arg10[%c1_120, %c0_121, %c0_122] : memref<2x8x32xf32, #tpu.memory_space<vmem>>, vector<1x8x32xf32>
    %201 = vector.shape_cast %200 : vector<1x8x32xf32> to vector<8x32xf32>
    %202 = vector.shape_cast %196 : vector<8x32xf32> to vector<1x8x32xf32>
    tpu.vector_store %arg10[%c1_120, %c0_121, %c0_122], %202 {strides = array<i32>} : memref<2x8x32xf32, #tpu.memory_space<vmem>>, vector<1x8x32xf32>,
    %203 = tpu.concatenate %112, %124, %136, %148, %160, %172, %184, %196 in 0 : vector<8x32xf32>, vector<8x32xf32>, vector<8x32xf32>, vector<8x32xf32>, vector<8x32xf32>, vector<8x32xf32>, vector<8x32xf32>, vector<8x32xf32> -> vector<64x32xf32>
    %204 = arith.truncf %203 : vector<64x32xf32> to vector<64x32xbf16>
    %c0_123 = arith.constant 0 : index
    %c0_124 = arith.constant 0 : index
    %205 = vector.load %arg7[%c0_123, %c0_124] : memref<32x128xf32, #tpu.memory_space<vmem>>, vector<32x128xf32>
    %206 = arith.truncf %205 : vector<32x128xf32> to vector<32x128xbf16>
    %cst_125 = arith.constant dense<0.000000e+00> : vector<64x128xf32>
    %207 = tpu.matmul %204, %206, %cst_125 {dimension_numbers = #tpu.dot_dimension_numbers<[1], [0], [0], [1], [0, 0, 1, 1], [], []>} : vector<64x32xbf16>, vector<32x128xbf16>, vector<64x128xf32> -> vector<64x128xf32>
    %c0_126 = arith.constant 0 : index
    %c0_127 = arith.constant 0 : index
    %208 = vector.load %arg8[%c0_126, %c0_127] : memref<1x128xf32, #tpu.memory_space<vmem>>, vector<1x128xf32>
    %209 = vector.broadcast %208 : vector<1x128xf32> to vector<64x128xf32>
    %210 = arith.addf %207, %209 : vector<64x128xf32>
    %c0_128 = arith.constant 0 : index
    %c0_129 = arith.constant 0 : index
    %211 = vector.load %arg9[%c0_128, %c0_129] : memref<64x128xf32, #tpu.memory_space<vmem>>, vector<64x128xf32>
    tpu.vector_store %arg9[%c0_128, %c0_129], %210 {strides = array<i32>} : memref<64x128xf32, #tpu.memory_space<vmem>>, vector<64x128xf32>,
    return
  }
}

</mosaic_0001>

<llo_original>
// kernel: rnn_forward.1
$region0: #{rnn_forward.1}
  #allocation0 [shape = 'u32[]', space=smem, size = 0x4, offset = 0x4, fixed_abs, tag = 'smem constant byte address 0x4 - core index']
  #allocation1 [shape = 'u32[144,128]{1,0:T(1,128)}', space=vmem, size = 0x12000, scoped, tag = 'internal scratch']
  #allocation2 [shape = 'f32[64,32]{1,0:T(8,128)}', space=vmem, size = 0x8000, scoped, tag = 'scratch operand']
  %s0 = inlined_call_operand.vmem [shape: s32[2,8], index: 0, kind: input, shape index: {}]
  %s1 = inlined_call_operand.vmem [shape: f32[50,32], index: 1, kind: input, shape index: {}]
  %s2 = inlined_call_operand.vmem [shape: f32[2,2,32], index: 2, kind: input, shape index: {}]
  %s3 = inlined_call_operand.vmem [shape: f32[64,32], index: 3, kind: input, shape index: {}]
  %s4 = inlined_call_operand.vmem [shape: f32[1,32], index: 4, kind: input, shape index: {}]
  %s5 = inlined_call_operand.vmem [shape: f32[64,32], index: 5, kind: input, shape index: {}]
  %s6 = inlined_call_operand.vmem [shape: f32[1,32], index: 6, kind: input, shape index: {}]
  %s7 = inlined_call_operand.vmem [shape: f32[32,128], index: 7, kind: input, shape index: {}]
  %s8 = inlined_call_operand.vmem [shape: f32[1,128], index: 8, kind: input, shape index: {}]
  %s9 = inlined_call_operand.vmem [shape: f32[64,128], index: 9, kind: output, shape index: {0}]
  %s10 = inlined_call_operand.vmem [shape: f32[2,8,32], index: 10, kind: output, shape index: {1}]
  %11 = xla_tuple %s9, %s10
  %s12 = sld [smem:[#allocation0]]
  $region58: #{rnn_forward.1} parent=0
    _
  %s14 = ssub.s32 1, %s12
  %s15 = scalar_select 0, %s14, %s12
  $region1: #{rnn_forward.1} parent=0
    #allocation3 [shape = 'u8[1024]{0}', space=smem, size = 0x400, scoped, tag = 'input window, operand 0, single buffered']
    #allocation4 [shape = 's32[1]{0}', space=sflag, size = 0x4, scoped, tag = 'scoped memory for rnn_forward.1']
    %16 = vsyncpa [#allocation4], 0
    // Predicated region
    $region2: #{rnn_forward.1} parent=1 // pred_check
      _
    $region3: #{rnn_forward.1} parent=1 // pred_check_branch
      %18 = sbr.rel (0) target = $region5
    $region4: #{rnn_forward.1} parent=1 // pred_region
      %s20 = ssub.s32 32, 32
      %21 = vsyncadd [#allocation4], %s20
      %s23 = sshll.u32 %s0, 4
      %s24 = int_to_ptr.vmem [resolvable:$true] %s23
      %26 = dma.vmem_to_smem %s24, 32, [#allocation3], [#allocation4]
    $region5: #{rnn_forward.1} parent=1 // pred_fallthru
      _
    // Predicated region
    $region6: #{rnn_forward.1} parent=1 // pred_check
      _
    $region7: #{rnn_forward.1} parent=1 // pred_check_branch
      %28 = sbr.rel (0) target = $region9
    $region8: #{rnn_forward.1} parent=1 // pred_region
      _
    $region9: #{rnn_forward.1} parent=1 // pred_fallthru
      _
    // Predicated region
    $region10: #{rnn_forward.1} parent=1 // pred_check
      _
    $region11: #{rnn_forward.1} parent=1 // pred_check_branch
      %30 = sbr.rel (0) target = $region13
    $region12: #{rnn_forward.1} parent=1 // pred_region
      _
    $region13: #{rnn_forward.1} parent=1 // pred_fallthru
      _
    // Predicated region
    $region14: #{rnn_forward.1} parent=1 // pred_check
      _
    $region15: #{rnn_forward.1} parent=1 // pred_check_branch
      %32 = sbr.rel (0) target = $region17
    $region16: #{rnn_forward.1} parent=1 // pred_region
      _
    $region17: #{rnn_forward.1} parent=1 // pred_fallthru
      _
    // Predicated region
    $region18: #{rnn_forward.1} parent=1 // pred_check
      _
    $region19: #{rnn_forward.1} parent=1 // pred_check_branch
      %34 = sbr.rel (0) target = $region21
    $region20: #{rnn_forward.1} parent=1 // pred_region
      _
    $region21: #{rnn_forward.1} parent=1 // pred_fallthru
      _
    // Predicated region
    $region22: #{rnn_forward.1} parent=1 // pred_check
      _
    $region23: #{rnn_forward.1} parent=1 // pred_check_branch
      %36 = sbr.rel (0) target = $region25
    $region24: #{rnn_forward.1} parent=1 // pred_region
      _
    $region25: #{rnn_forward.1} parent=1 // pred_fallthru
      _
    // Predicated region
    $region26: #{rnn_forward.1} parent=1 // pred_check
      _
    $region27: #{rnn_forward.1} parent=1 // pred_check_branch
      %38 = sbr.rel (0) target = $region29
    $region28: #{rnn_forward.1} parent=1 // pred_region
      _
    $region29: #{rnn_forward.1} parent=1 // pred_fallthru
      _
    // Predicated region
    $region30: #{rnn_forward.1} parent=1 // pred_check
      _
    $region31: #{rnn_forward.1} parent=1 // pred_check_branch
      %40 = sbr.rel (0) target = $region33
    $region32: #{rnn_forward.1} parent=1 // pred_region
      _
    $region33: #{rnn_forward.1} parent=1 // pred_fallthru
      _
    // Predicated region
    $region34: #{rnn_forward.1} parent=1 // pred_check
      _
    $region35: #{rnn_forward.1} parent=1 // pred_check_branch
      %42 = sbr.rel (0) target = $region37
    $region36: #{rnn_forward.1} parent=1 // pred_region
      _
    $region37: #{rnn_forward.1} parent=1 // pred_fallthru
      _
    // Predicated region
    $region38: #{rnn_forward.1} parent=1 // pred_check
      _
    $region39: #{rnn_forward.1} parent=1 // pred_check_branch
      %44 = sbr.rel (0) target = $region41
    $region40: #{rnn_forward.1} parent=1 // pred_region
      %45 = dma.done [#allocation4], 32
    $region41: #{rnn_forward.1} parent=1 // pred_fallthru
      _
    %46 = sfence
    %vm48 = vcmask 261120
    %49 = vst.msk [vmem:[#allocation2] sm:$0xff] %vm48, 0.0
    %50 = vst.msk [vmem:[#allocation2 + $0x8] sm:$0xff] %vm48, 0.0
    %51 = vst.msk [vmem:[#allocation2 + $0x10] sm:$0xff] %vm48, 0.0
    %52 = vst.msk [vmem:[#allocation2 + $0x18] sm:$0xff] %vm48, 0.0
    %53 = vst.msk [vmem:[#allocation2 + $0x20] sm:$0xff] %vm48, 0.0
    %54 = vst.msk [vmem:[#allocation2 + $0x28] sm:$0xff] %vm48, 0.0
    %55 = vst.msk [vmem:[#allocation2 + $0x30] sm:$0xff] %vm48, 0.0
    %56 = vst.msk [vmem:[#allocation2 + $0x38] sm:$0xff] %vm48, 0.0
    %s57 = sld [smem:[#allocation3]]
    %s58 = scalar_lea.vmem %s1, %s57
    %v59 = vld [vmem:[%s58] sm:$0x1]
    %vm60 = vcmask 253952
    %61 = vst.msk [vmem:[#allocation2] sm:$0x1] %vm60, %v59
    %s62 = sld [smem:[#allocation3 + $0x80]]
    %s63 = scalar_lea.vmem %s1, %s62
    %v64 = vld [vmem:[%s63] sm:$0x1]
    %65 = vst.msk [vmem:[#allocation2 + $0x1] sm:$0x1] %vm60, %v64
    %s66 = sld [smem:[#allocation3 + $0x1]]
    %s67 = scalar_lea.vmem %s1, %s66
    %v68 = vld [vmem:[%s67] sm:$0x1]
    %69 = vst.msk [vmem:[#allocation2 + $0x8] sm:$0x1] %vm60, %v68
    %s70 = sld [smem:[#allocation3 + $0x81]]
    %s71 = scalar_lea.vmem %s1, %s70
    %v72 = vld [vmem:[%s71] sm:$0x1]
    %73 = vst.msk [vmem:[#allocation2 + $0x9] sm:$0x1] %vm60, %v72
    %s74 = sld [smem:[#allocation3 + $0x2]]
    %s75 = scalar_lea.vmem %s1, %s74
    %v76 = vld [vmem:[%s75] sm:$0x1]
    %77 = vst.msk [vmem:[#allocation2 + $0x10] sm:$0x1] %vm60, %v76
    %s78 = sld [smem:[#allocation3 + $0x82]]
    %s79 = scalar_lea.vmem %s1, %s78
    %v80 = vld [vmem:[%s79] sm:$0x1]
    %81 = vst.msk [vmem:[#allocation2 + $0x11] sm:$0x1] %vm60, %v80
    %s82 = sld [smem:[#allocation3 + $0x3]]
    %s83 = scalar_lea.vmem %s1, %s82
    %v84 = vld [vmem:[%s83] sm:$0x1]
    %85 = vst.msk [vmem:[#allocation2 + $0x18] sm:$0x1] %vm60, %v84
    %s86 = sld [smem:[#allocation3 + $0x83]]
    %s87 = scalar_lea.vmem %s1, %s86
    %v88 = vld [vmem:[%s87] sm:$0x1]
    %89 = vst.msk [vmem:[#allocation2 + $0x19] sm:$0x1] %vm60, %v88
    %s90 = sld [smem:[#allocation3 + $0x4]]
    %s91 = scalar_lea.vmem %s1, %s90
    %v92 = vld [vmem:[%s91] sm:$0x1]
    %93 = vst.msk [vmem:[#allocation2 + $0x20] sm:$0x1] %vm60, %v92
    %s94 = sld [smem:[#allocation3 + $0x84]]
    %s95 = scalar_lea.vmem %s1, %s94
    %v96 = vld [vmem:[%s95] sm:$0x1]
    %97 = vst.msk [vmem:[#allocation2 + $0x21] sm:$0x1] %vm60, %v96
    %s98 = sld [smem:[#allocation3 + $0x5]]
    %s99 = scalar_lea.vmem %s1, %s98
    %v100 = vld [vmem:[%s99] sm:$0x1]
    %101 = vst.msk [vmem:[#allocation2 + $0x28] sm:$0x1] %vm60, %v100
    %s102 = sld [smem:[#allocation3 + $0x85]]
    %s103 = scalar_lea.vmem %s1, %s102
    %v104 = vld [vmem:[%s103] sm:$0x1]
    %105 = vst.msk [vmem:[#allocation2 + $0x29] sm:$0x1] %vm60, %v104
    %s106 = sld [smem:[#allocation3 + $0x6]]
    %s107 = scalar_lea.vmem %s1, %s106
    %v108 = vld [vmem:[%s107] sm:$0x1]
    %109 = vst.msk [vmem:[#allocation2 + $0x30] sm:$0x1] %vm60, %v108
    %s110 = sld [smem:[#allocation3 + $0x86]]
    %s111 = scalar_lea.vmem %s1, %s110
    %v112 = vld [vmem:[%s111] sm:$0x1]
    %113 = vst.msk [vmem:[#allocation2 + $0x31] sm:$0x1] %vm60, %v112
    %s114 = sld [smem:[#allocation3 + $0x7]]
    %s115 = scalar_lea.vmem %s1, %s114
    %v116 = vld [vmem:[%s115] sm:$0x1]
    %117 = vst.msk [vmem:[#allocation2 + $0x38] sm:$0x1] %vm60, %v116
    %s118 = sld [smem:[#allocation3 + $0x87]]
    %s119 = scalar_lea.vmem %s1, %s118
    %v120 = vld [vmem:[%s119] sm:$0x1]
    %121 = vst.msk [vmem:[#allocation2 + $0x39] sm:$0x1] %vm60, %v120
    %v122 = vld [vmem:[%s3] sm:$0xff]
    %v123 = vld [vmem:[%s3 + $0x8] sm:$0xff]
    %v124 = vld [vmem:[%s3 + $0x10] sm:$0xff]
    %v125 = vld [vmem:[%s3 + $0x18] sm:$0xff]
    %v126 = vld [vmem:[%s3 + $0x20] sm:$0xff]
    %v127 = vld [vmem:[%s3 + $0x28] sm:$0xff]
    %v128 = vld [vmem:[%s3 + $0x30] sm:$0xff]
    %v129 = vld [vmem:[%s3 + $0x38] sm:$0xff]
    %v130 = vpack.c.bf16 %v123, %v122
    %v131 = vpack.c.bf16 %v125, %v124
    %v132 = vpack.c.bf16 %v127, %v126
    %v133 = vpack.c.bf16 %v129, %v128
    %v134 = vld [vmem:[%s4] sm:$0x1]
    %v135 = vld [vmem:[%s5] sm:$0xff]
    %v136 = vld [vmem:[%s5 + $0x8] sm:$0xff]
    %v137 = vld [vmem:[%s5 + $0x10] sm:$0xff]
    %v138 = vld [vmem:[%s5 + $0x18] sm:$0xff]
    %v139 = vld [vmem:[%s5 + $0x20] sm:$0xff]
    %v140 = vld [vmem:[%s5 + $0x28] sm:$0xff]
    %v141 = vld [vmem:[%s5 + $0x30] sm:$0xff]
    %v142 = vld [vmem:[%s5 + $0x38] sm:$0xff]
    %v143 = vpack.c.bf16 %v136, %v135
    %v144 = vpack.c.bf16 %v138, %v137
    %v145 = vpack.c.bf16 %v140, %v139
    %v146 = vpack.c.bf16 %v142, %v141
    %v147 = vld [vmem:[%s6] sm:$0x1]
    %v149 = vlaneseq
    %v150 = vshrl.u32 %v149, 7
    %v151 = vsub.s32 0, %v150
    %v152 = vrot.slane %v147, %v151
    %v154 = vld [vmem:[#allocation2] sm:$0xff]
    %v155 = vld [vmem:[#allocation2 + $0x8] sm:$0xff]
    %v156 = vld [vmem:[#allocation2 + $0x10] sm:$0xff]
    %v157 = vld [vmem:[#allocation2 + $0x18] sm:$0xff]
    %v158 = vld [vmem:[#allocation2 + $0x20] sm:$0xff]
    %v159 = vld [vmem:[#allocation2 + $0x28] sm:$0xff]
    %v160 = vld [vmem:[#allocation2 + $0x30] sm:$0xff]
    %v161 = vld [vmem:[#allocation2 + $0x38] sm:$0xff]
    %v162 = vpack.c.bf16 %v155, %v154
    %v163 = vpack.c.bf16 %v157, %v156
    %v164 = vpack.c.bf16 %v159, %v158
    %v165 = vpack.c.bf16 %v161, %v160
    %v167 = vlaneseq
    %v168 = vshrl.u32 %v167, 7
    %v169 = vsub.s32 0, %v168
    %v170 = vrot.slane %v134, %v169
    %v173 = vsel %vm48, %v162, 0
    %v176 = vsel %vm48, %v163, 0
    %v179 = vsel %vm48, %v164, 0
    %v182 = vsel %vm48, %v165, 0
    %184 = vmatprep.subr.bf16.mxu0 0
    %185 = vmatpush1.bf16.msra.mxu0 0
    %186 = vmatprep.subr.bf16.mxu0 0
    %187 = vmatpush1.bf16.msra.mxu0 0
    %188 = vmatprep.subr.bf16.mxu0 0
    %189 = vmatpush1.bf16.msra.mxu0 0
    %190 = vmatprep.subr.bf16.mxu0 0
    %191 = vmatpush1.bf16.msra.mxu0 0
    %192 = vmatprep.subr.bf16.mxu0 0
    %193 = vmatpush1.bf16.msra.mxu0 0
    %194 = vmatprep.subr.bf16.mxu0 0
    %195 = vmatpush1.bf16.msra.mxu0 0
    %196 = vmatprep.subr.bf16.mxu0 0
    %197 = vmatpush1.bf16.msra.mxu0 %v131
    %198 = vmatprep.subr.bf16.mxu0 0
    %199 = vmatpush1.bf16.msra.mxu0 %v130
    %200 = vmatprep.subr.bf16.mxu0 0
    %201 = vmatpush2.bf16.msra.mxu0 0
    %202 = vmatprep.subr.bf16.mxu0 0
    %203 = vmatpush2.bf16.msra.mxu0 0
    %204 = vmatprep.subr.bf16.mxu0 0
    %205 = vmatpush2.bf16.msra.mxu0 0
    %206 = vmatprep.subr.bf16.mxu0 0
    %207 = vmatpush2.bf16.msra.mxu0 0
    %208 = vmatprep.subr.bf16.mxu0 0
    %209 = vmatpush2.bf16.msra.mxu0 0
    %210 = vmatprep.subr.bf16.mxu0 0
    %211 = vmatpush2.bf16.msra.mxu0 0
    %212 = vmatprep.subr.bf16.mxu0 0
    %213 = vmatpush2.bf16.msra.mxu0 0
    %214 = vmatprep.subr.bf16.mxu0 0
    %215 = vmatpush2.bf16.msra.mxu0 0
    %216 = vmatprep.mubr.bf16.mxu0 0
    %217 = vmatmul.mubr.bf16.gmra.mxu0 %v173
    %v218 = vpop.f32.mrf.mxu0
    %v219 = vadd.f32 %v170, %v218
    %v220 = vpop.f32.mrf.mxu0
    %v221 = vpop.f32.mrf.mxu0
    %v222 = vadd.f32 %v170, %v221
    %v223 = vpop.f32.mrf.mxu0
    %224 = vmatprep.mubr.bf16.mxu0 0
    %225 = vmatmul.mubr.bf16.gmra.mxu0 %v176
    %v226 = vpop.f32.mrf.mxu0
    %v227 = vadd.f32 %v170, %v226
    %v228 = vpop.f32.mrf.mxu0
    %v229 = vpop.f32.mrf.mxu0
    %v230 = vadd.f32 %v170, %v229
    %v231 = vpop.f32.mrf.mxu0
    %232 = vmatprep.mubr.bf16.mxu0 0
    %233 = vmatmul.mubr.bf16.gmra.mxu0 %v179
    %v234 = vpop.f32.mrf.mxu0
    %v235 = vadd.f32 %v170, %v234
    %v236 = vpop.f32.mrf.mxu0
    %v237 = vpop.f32.mrf.mxu0
    %v238 = vadd.f32 %v170, %v237
    %v239 = vpop.f32.mrf.mxu0
    %240 = vmatprep.mubr.bf16.mxu0 0
    %241 = vmatmul.mubr.bf16.gmra.mxu0 %v182
    %v242 = vpop.f32.mrf.mxu0
    %v243 = vadd.f32 %v170, %v242
    %v244 = vpop.f32.mrf.mxu0
    %v245 = vpop.f32.mrf.mxu0
    %v246 = vadd.f32 %v170, %v245
    %v247 = vpop.f32.mrf.mxu0
    %248 = vdwg.mxu0
    %249 = vst.msk [vmem:[%s10] sm:$0xff] %vm48, 0.0
    %250 = vst.msk [vmem:[%s10 + $0x8] sm:$0xff] %vm48, 0.0
    %v251 = vld [vmem:[%s2] sm:$0x3]
    %vm252 = vcmask 254976
    %253 = vst.msk [vmem:[%s10] sm:$0x3] %vm252, %v251
    %s254 = scalar_lea.vmem %s2, 2
    %v255 = vld [vmem:[%s254] sm:$0x3]
    %s256 = scalar_lea.vmem %s10, 8
    %257 = vst.msk [vmem:[%s256] sm:$0x3] %vm252, %v255
    %v258 = vld [vmem:[%s10] sm:$0xff]
    %v259 = vld [vmem:[%s256] sm:$0xff]
    %v260 = vpack.c.bf16 %v258, %v258
    %v262 = vsel %vm48, %v260, 0
    %264 = vmatprep.subr.bf16.mxu0 0
    %265 = vmatpush1.bf16.msra.mxu0 0
    %266 = vmatprep.subr.bf16.mxu0 0
    %267 = vmatpush1.bf16.msra.mxu0 0
    %268 = vmatprep.subr.bf16.mxu0 0
    %269 = vmatpush1.bf16.msra.mxu0 0
    %270 = vmatprep.subr.bf16.mxu0 0
    %271 = vmatpush1.bf16.msra.mxu0 0
    %272 = vmatprep.subr.bf16.mxu0 0
    %273 = vmatpush1.bf16.msra.mxu0 0
    %274 = vmatprep.subr.bf16.mxu0 0
    %275 = vmatpush1.bf16.msra.mxu0 0
    %276 = vmatprep.subr.bf16.mxu0 0
    %277 = vmatpush1.bf16.msra.mxu0 %v133
    %278 = vmatprep.subr.bf16.mxu0 0
    %279 = vmatpush1.bf16.msra.mxu0 %v132
    %280 = vmatprep.subr.bf16.mxu0 0
    %281 = vmatpush2.bf16.msra.mxu0 0
    %282 = vmatprep.subr.bf16.mxu0 0
    %283 = vmatpush2.bf16.msra.mxu0 0
    %284 = vmatprep.subr.bf16.mxu0 0
    %285 = vmatpush2.bf16.msra.mxu0 0
    %286 = vmatprep.subr.bf16.mxu0 0
    %287 = vmatpush2.bf16.msra.mxu0 0
    %288 = vmatprep.subr.bf16.mxu0 0
    %289 = vmatpush2.bf16.msra.mxu0 0
    %290 = vmatprep.subr.bf16.mxu0 0
    %291 = vmatpush2.bf16.msra.mxu0 0
    %292 = vmatprep.subr.bf16.mxu0 0
    %293 = vmatpush2.bf16.msra.mxu0 0
    %294 = vmatprep.subr.bf16.mxu0 0
    %295 = vmatpush2.bf16.msra.mxu0 0
    %296 = vmatprep.mubr.bf16.mxu0 0
    %297 = vmatmul.mubr.bf16.gmra.mxu0 %v262
    %v298 = vpop.f32.mrf.mxu0
    %v299 = vadd.f32 0.0, %v298
    %v300 = vpop.f32.mrf.mxu0
    %v301 = vpop.f32.mrf.mxu0
    %v302 = vpop.f32.mrf.mxu0
    %303 = vdwg.mxu0
    %v304 = vadd.f32 %v219, %v299
    %v305 = vtanh.pop %v304
    %v306 = vpack.c.bf16 %v305, %v305
    %v307 = vpack.c.bf16 %v259, %v259
    %v309 = vsel %vm48, %v307, 0
    %311 = vmatprep.subr.bf16.mxu0 0
    %312 = vmatpush1.bf16.msra.mxu0 0
    %313 = vmatprep.subr.bf16.mxu0 0
    %314 = vmatpush1.bf16.msra.mxu0 0
    %315 = vmatprep.subr.bf16.mxu0 0
    %316 = vmatpush1.bf16.msra.mxu0 0
    %317 = vmatprep.subr.bf16.mxu0 0
    %318 = vmatpush1.bf16.msra.mxu0 0
    %319 = vmatprep.subr.bf16.mxu0 0
    %320 = vmatpush1.bf16.msra.mxu0 0
    %321 = vmatprep.subr.bf16.mxu0 0
    %322 = vmatpush1.bf16.msra.mxu0 0
    %323 = vmatprep.subr.bf16.mxu0 0
    %324 = vmatpush1.bf16.msra.mxu0 %v146
    %325 = vmatprep.subr.bf16.mxu0 0
    %326 = vmatpush1.bf16.msra.mxu0 %v145
    %327 = vmatprep.subr.bf16.mxu0 0
    %328 = vmatpush2.bf16.msra.mxu0 0
    %329 = vmatprep.subr.bf16.mxu0 0
    %330 = vmatpush2.bf16.msra.mxu0 0
    %331 = vmatprep.subr.bf16.mxu0 0
    %332 = vmatpush2.bf16.msra.mxu0 0
    %333 = vmatprep.subr.bf16.mxu0 0
    %334 = vmatpush2.bf16.msra.mxu0 0
    %335 = vmatprep.subr.bf16.mxu0 0
    %336 = vmatpush2.bf16.msra.mxu0 0
    %337 = vmatprep.subr.bf16.mxu0 0
    %338 = vmatpush2.bf16.msra.mxu0 0
    %339 = vmatprep.subr.bf16.mxu0 0
    %340 = vmatpush2.bf16.msra.mxu0 0
    %341 = vmatprep.subr.bf16.mxu0 0
    %342 = vmatpush2.bf16.msra.mxu0 0
    %343 = vmatprep.mubr.bf16.mxu0 0
    %344 = vmatmul.mubr.bf16.gmra.mxu0 %v309
    %v345 = vpop.f32.mrf.mxu0
    %v346 = vadd.f32 0.0, %v345
    %v347 = vpop.f32.mrf.mxu0
    %v348 = vpop.f32.mrf.mxu0
    %v349 = vpop.f32.mrf.mxu0
    %350 = vdwg.mxu0
    %v352 = vsel %vm48, %v306, 0
    %354 = vmatprep.subr.bf16.mxu0 0
    %355 = vmatpush1.bf16.msra.mxu0 0
    %356 = vmatprep.subr.bf16.mxu0 0
    %357 = vmatpush1.bf16.msra.mxu0 0
    %358 = vmatprep.subr.bf16.mxu0 0
    %359 = vmatpush1.bf16.msra.mxu0 0
    %360 = vmatprep.subr.bf16.mxu0 0
    %361 = vmatpush1.bf16.msra.mxu0 0
    %362 = vmatprep.subr.bf16.mxu0 0
    %363 = vmatpush1.bf16.msra.mxu0 0
    %364 = vmatprep.subr.bf16.mxu0 0
    %365 = vmatpush1.bf16.msra.mxu0 0
    %366 = vmatprep.subr.bf16.mxu0 0
    %367 = vmatpush1.bf16.msra.mxu0 %v144
    %368 = vmatprep.subr.bf16.mxu0 0
    %369 = vmatpush1.bf16.msra.mxu0 %v143
    %370 = vmatprep.subr.bf16.mxu0 0
    %371 = vmatpush2.bf16.msra.mxu0 0
    %372 = vmatprep.subr.bf16.mxu0 0
    %373 = vmatpush2.bf16.msra.mxu0 0
    %374 = vmatprep.subr.bf16.mxu0 0
    %375 = vmatpush2.bf16.msra.mxu0 0
    %376 = vmatprep.subr.bf16.mxu0 0
    %377 = vmatpush2.bf16.msra.mxu0 0
    %378 = vmatprep.subr.bf16.mxu0 0
    %379 = vmatpush2.bf16.msra.mxu0 0
    %380 = vmatprep.subr.bf16.mxu0 0
    %381 = vmatpush2.bf16.msra.mxu0 0
    %382 = vmatprep.subr.bf16.mxu0 0
    %383 = vmatpush2.bf16.msra.mxu0 0
    %384 = vmatprep.subr.bf16.mxu0 0
    %385 = vmatpush2.bf16.msra.mxu0 0
    %386 = vmatprep.mubr.bf16.mxu0 0
    %387 = vmatmul.mubr.bf16.gmra.mxu0 %v352
    %v388 = vpop.f32.mrf.mxu0
    %v389 = vadd.f32 %v346, %v388
    %v390 = vpop.f32.mrf.mxu0
    %v391 = vpop.f32.mrf.mxu0
    %v392 = vpop.f32.mrf.mxu0
    %393 = vdwg.mxu0
    %v394 = vadd.f32 %v389, %v152
    %v395 = vtanh.pop %v394
    %396 = vmatprep.subr.bf16.mxu0 0
    %397 = vmatpush1.bf16.msra.mxu0 0
    %398 = vmatprep.subr.bf16.mxu0 0
    %399 = vmatpush1.bf16.msra.mxu0 0
    %400 = vmatprep.subr.bf16.mxu0 0
    %401 = vmatpush1.bf16.msra.mxu0 0
    %402 = vmatprep.subr.bf16.mxu0 0
    %403 = vmatpush1.bf16.msra.mxu0 0
    %404 = vmatprep.subr.bf16.mxu0 0
    %405 = vmatpush1.bf16.msra.mxu0 0
    %406 = vmatprep.subr.bf16.mxu0 0
    %407 = vmatpush1.bf16.msra.mxu0 0
    %408 = vmatprep.subr.bf16.mxu0 0
    %409 = vmatpush1.bf16.msra.mxu0 %v133
    %410 = vmatprep.subr.bf16.mxu0 0
    %411 = vmatpush1.bf16.msra.mxu0 %v132
    %412 = vmatprep.subr.bf16.mxu0 0
    %413 = vmatpush2.bf16.msra.mxu0 0
    %414 = vmatprep.subr.bf16.mxu0 0
    %415 = vmatpush2.bf16.msra.mxu0 0
    %416 = vmatprep.subr.bf16.mxu0 0
    %417 = vmatpush2.bf16.msra.mxu0 0
    %418 = vmatprep.subr.bf16.mxu0 0
    %419 = vmatpush2.bf16.msra.mxu0 0
    %420 = vmatprep.subr.bf16.mxu0 0
    %421 = vmatpush2.bf16.msra.mxu0 0
    %422 = vmatprep.subr.bf16.mxu0 0
    %423 = vmatpush2.bf16.msra.mxu0 0
    %424 = vmatprep.subr.bf16.mxu0 0
    %425 = vmatpush2.bf16.msra.mxu0 0
    %426 = vmatprep.subr.bf16.mxu0 0
    %427 = vmatpush2.bf16.msra.mxu0 0
    %428 = vmatprep.mubr.bf16.mxu0 0
    %429 = vmatmul.mubr.bf16.gmra.mxu0 %v352
    %v430 = vpop.f32.mrf.mxu0
    %v431 = vadd.f32 0.0, %v430
    %v432 = vpop.f32.mrf.mxu0
    %v433 = vpop.f32.mrf.mxu0
    %v434 = vpop.f32.mrf.mxu0
    %435 = vdwg.mxu0
    %v436 = vadd.f32 %v222, %v431
    %v437 = vtanh.pop %v436
    %v438 = vpack.c.bf16 %v437, %v437
    %v439 = vpack.c.bf16 %v395, %v395
    %v441 = vsel %vm48, %v439, 0
    %443 = vmatprep.subr.bf16.mxu0 0
    %444 = vmatpush1.bf16.msra.mxu0 0
    %445 = vmatprep.subr.bf16.mxu0 0
    %446 = vmatpush1.bf16.msra.mxu0 0
    %447 = vmatprep.subr.bf16.mxu0 0
    %448 = vmatpush1.bf16.msra.mxu0 0
    %449 = vmatprep.subr.bf16.mxu0 0
    %450 = vmatpush1.bf16.msra.mxu0 0
    %451 = vmatprep.subr.bf16.mxu0 0
    %452 = vmatpush1.bf16.msra.mxu0 0
    %453 = vmatprep.subr.bf16.mxu0 0
    %454 = vmatpush1.bf16.msra.mxu0 0
    %455 = vmatprep.subr.bf16.mxu0 0
    %456 = vmatpush1.bf16.msra.mxu0 %v146
    %457 = vmatprep.subr.bf16.mxu0 0
    %458 = vmatpush1.bf16.msra.mxu0 %v145
    %459 = vmatprep.subr.bf16.mxu0 0
    %460 = vmatpush2.bf16.msra.mxu0 0
    %461 = vmatprep.subr.bf16.mxu0 0
    %462 = vmatpush2.bf16.msra.mxu0 0
    %463 = vmatprep.subr.bf16.mxu0 0
    %464 = vmatpush2.bf16.msra.mxu0 0
    %465 = vmatprep.subr.bf16.mxu0 0
    %466 = vmatpush2.bf16.msra.mxu0 0
    %467 = vmatprep.subr.bf16.mxu0 0
    %468 = vmatpush2.bf16.msra.mxu0 0
    %469 = vmatprep.subr.bf16.mxu0 0
    %470 = vmatpush2.bf16.msra.mxu0 0
    %471 = vmatprep.subr.bf16.mxu0 0
    %472 = vmatpush2.bf16.msra.mxu0 0
    %473 = vmatprep.subr.bf16.mxu0 0
    %474 = vmatpush2.bf16.msra.mxu0 0
    %475 = vmatprep.mubr.bf16.mxu0 0
    %476 = vmatmul.mubr.bf16.gmra.mxu0 %v441
    %v477 = vpop.f32.mrf.mxu0
    %v478 = vadd.f32 0.0, %v477
    %v479 = vpop.f32.mrf.mxu0
    %v480 = vpop.f32.mrf.mxu0
    %v481 = vpop.f32.mrf.mxu0
    %482 = vdwg.mxu0
    %v484 = vsel %vm48, %v438, 0
    %486 = vmatprep.subr.bf16.mxu0 0
    %487 = vmatpush1.bf16.msra.mxu0 0
    %488 = vmatprep.subr.bf16.mxu0 0
    %489 = vmatpush1.bf16.msra.mxu0 0
    %490 = vmatprep.subr.bf16.mxu0 0
    %491 = vmatpush1.bf16.msra.mxu0 0
    %492 = vmatprep.subr.bf16.mxu0 0
    %493 = vmatpush1.bf16.msra.mxu0 0
    %494 = vmatprep.subr.bf16.mxu0 0
    %495 = vmatpush1.bf16.msra.mxu0 0
    %496 = vmatprep.subr.bf16.mxu0 0
    %497 = vmatpush1.bf16.msra.mxu0 0
    %498 = vmatprep.subr.bf16.mxu0 0
    %499 = vmatpush1.bf16.msra.mxu0 %v144
    %500 = vmatprep.subr.bf16.mxu0 0
    %501 = vmatpush1.bf16.msra.mxu0 %v143
    %502 = vmatprep.subr.bf16.mxu0 0
    %503 = vmatpush2.bf16.msra.mxu0 0
    %504 = vmatprep.subr.bf16.mxu0 0
    %505 = vmatpush2.bf16.msra.mxu0 0
    %506 = vmatprep.subr.bf16.mxu0 0
    %507 = vmatpush2.bf16.msra.mxu0 0
    %508 = vmatprep.subr.bf16.mxu0 0
    %509 = vmatpush2.bf16.msra.mxu0 0
    %510 = vmatprep.subr.bf16.mxu0 0
    %511 = vmatpush2.bf16.msra.mxu0 0
    %512 = vmatprep.subr.bf16.mxu0 0
    %513 = vmatpush2.bf16.msra.mxu0 0
    %514 = vmatprep.subr.bf16.mxu0 0
    %515 = vmatpush2.bf16.msra.mxu0 0
    %516 = vmatprep.subr.bf16.mxu0 0
    %517 = vmatpush2.bf16.msra.mxu0 0
    %518 = vmatprep.mubr.bf16.mxu0 0
    %519 = vmatmul.mubr.bf16.gmra.mxu0 %v484
    %v520 = vpop.f32.mrf.mxu0
    %v521 = vadd.f32 %v478, %v520
    %v522 = vpop.f32.mrf.mxu0
    %v523 = vpop.f32.mrf.mxu0
    %v524 = vpop.f32.mrf.mxu0
    %525 = vdwg.mxu0
    %v526 = vadd.f32 %v521, %v152
    %v527 = vtanh.pop %v526
    %528 = vmatprep.subr.bf16.mxu0 0
    %529 = vmatpush1.bf16.msra.mxu0 0
    %530 = vmatprep.subr.bf16.mxu0 0
    %531 = vmatpush1.bf16.msra.mxu0 0
    %532 = vmatprep.subr.bf16.mxu0 0
    %533 = vmatpush1.bf16.msra.mxu0 0
    %534 = vmatprep.subr.bf16.mxu0 0
    %535 = vmatpush1.bf16.msra.mxu0 0
    %536 = vmatprep.subr.bf16.mxu0 0
    %537 = vmatpush1.bf16.msra.mxu0 0
    %538 = vmatprep.subr.bf16.mxu0 0
    %539 = vmatpush1.bf16.msra.mxu0 0
    %540 = vmatprep.subr.bf16.mxu0 0
    %541 = vmatpush1.bf16.msra.mxu0 %v133
    %542 = vmatprep.subr.bf16.mxu0 0
    %543 = vmatpush1.bf16.msra.mxu0 %v132
    %544 = vmatprep.subr.bf16.mxu0 0
    %545 = vmatpush2.bf16.msra.mxu0 0
    %546 = vmatprep.subr.bf16.mxu0 0
    %547 = vmatpush2.bf16.msra.mxu0 0
    %548 = vmatprep.subr.bf16.mxu0 0
    %549 = vmatpush2.bf16.msra.mxu0 0
    %550 = vmatprep.subr.bf16.mxu0 0
    %551 = vmatpush2.bf16.msra.mxu0 0
    %552 = vmatprep.subr.bf16.mxu0 0
    %553 = vmatpush2.bf16.msra.mxu0 0
    %554 = vmatprep.subr.bf16.mxu0 0
    %555 = vmatpush2.bf16.msra.mxu0 0
    %556 = vmatprep.subr.bf16.mxu0 0
    %557 = vmatpush2.bf16.msra.mxu0 0
    %558 = vmatprep.subr.bf16.mxu0 0
    %559 = vmatpush2.bf16.msra.mxu0 0
    %560 = vmatprep.mubr.bf16.mxu0 0
    %561 = vmatmul.mubr.bf16.gmra.mxu0 %v484
    %v562 = vpop.f32.mrf.mxu0
    %v563 = vadd.f32 0.0, %v562
    %v564 = vpop.f32.mrf.mxu0
    %v565 = vpop.f32.mrf.mxu0
    %v566 = vpop.f32.mrf.mxu0
    %567 = vdwg.mxu0
    %v568 = vadd.f32 %v227, %v563
    %v569 = vtanh.pop %v568
    %v570 = vpack.c.bf16 %v569, %v569
    %v571 = vpack.c.bf16 %v527, %v527
    %v573 = vsel %vm48, %v571, 0
    %575 = vmatprep.subr.bf16.mxu0 0
    %576 = vmatpush1.bf16.msra.mxu0 0
    %577 = vmatprep.subr.bf16.mxu0 0
    %578 = vmatpush1.bf16.msra.mxu0 0
    %579 = vmatprep.subr.bf16.mxu0 0
    %580 = vmatpush1.bf16.msra.mxu0 0
    %581 = vmatprep.subr.bf16.mxu0 0
    %582 = vmatpush1.bf16.msra.mxu0 0
    %583 = vmatprep.subr.bf16.mxu0 0
    %584 = vmatpush1.bf16.msra.mxu0 0
    %585 = vmatprep.subr.bf16.mxu0 0
    %586 = vmatpush1.bf16.msra.mxu0 0
    %587 = vmatprep.subr.bf16.mxu0 0
    %588 = vmatpush1.bf16.msra.mxu0 %v146
    %589 = vmatprep.subr.bf16.mxu0 0
    %590 = vmatpush1.bf16.msra.mxu0 %v145
    %591 = vmatprep.subr.bf16.mxu0 0
    %592 = vmatpush2.bf16.msra.mxu0 0
    %593 = vmatprep.subr.bf16.mxu0 0
    %594 = vmatpush2.bf16.msra.mxu0 0
    %595 = vmatprep.subr.bf16.mxu0 0
    %596 = vmatpush2.bf16.msra.mxu0 0
    %597 = vmatprep.subr.bf16.mxu0 0
    %598 = vmatpush2.bf16.msra.mxu0 0
    %599 = vmatprep.subr.bf16.mxu0 0
    %600 = vmatpush2.bf16.msra.mxu0 0
    %601 = vmatprep.subr.bf16.mxu0 0
    %602 = vmatpush2.bf16.msra.mxu0 0
    %603 = vmatprep.subr.bf16.mxu0 0
    %604 = vmatpush2.bf16.msra.mxu0 0
    %605 = vmatprep.subr.bf16.mxu0 0
    %606 = vmatpush2.bf16.msra.mxu0 0
    %607 = vmatprep.mubr.bf16.mxu0 0
    %608 = vmatmul.mubr.bf16.gmra.mxu0 %v573
    %v609 = vpop.f32.mrf.mxu0
    %v610 = vadd.f32 0.0, %v609
    %v611 = vpop.f32.mrf.mxu0
    %v612 = vpop.f32.mrf.mxu0
    %v613 = vpop.f32.mrf.mxu0
    %614 = vdwg.mxu0
    %v616 = vsel %vm48, %v570, 0
    %618 = vmatprep.subr.bf16.mxu0 0
    %619 = vmatpush1.bf16.msra.mxu0 0
    %620 = vmatprep.subr.bf16.mxu0 0
    %621 = vmatpush1.bf16.msra.mxu0 0
    %622 = vmatprep.subr.bf16.mxu0 0
    %623 = vmatpush1.bf16.msra.mxu0 0
    %624 = vmatprep.subr.bf16.mxu0 0
    %625 = vmatpush1.bf16.msra.mxu0 0
    %626 = vmatprep.subr.bf16.mxu0 0
    %627 = vmatpush1.bf16.msra.mxu0 0
    %628 = vmatprep.subr.bf16.mxu0 0
    %629 = vmatpush1.bf16.msra.mxu0 0
    %630 = vmatprep.subr.bf16.mxu0 0
    %631 = vmatpush1.bf16.msra.mxu0 %v144
    %632 = vmatprep.subr.bf16.mxu0 0
    %633 = vmatpush1.bf16.msra.mxu0 %v143
    %634 = vmatprep.subr.bf16.mxu0 0
    %635 = vmatpush2.bf16.msra.mxu0 0
    %636 = vmatprep.subr.bf16.mxu0 0
    %637 = vmatpush2.bf16.msra.mxu0 0
    %638 = vmatprep.subr.bf16.mxu0 0
    %639 = vmatpush2.bf16.msra.mxu0 0
    %640 = vmatprep.subr.bf16.mxu0 0
    %641 = vmatpush2.bf16.msra.mxu0 0
    %642 = vmatprep.subr.bf16.mxu0 0
    %643 = vmatpush2.bf16.msra.mxu0 0
    %644 = vmatprep.subr.bf16.mxu0 0
    %645 = vmatpush2.bf16.msra.mxu0 0
    %646 = vmatprep.subr.bf16.mxu0 0
    %647 = vmatpush2.bf16.msra.mxu0 0
    %648 = vmatprep.subr.bf16.mxu0 0
    %649 = vmatpush2.bf16.msra.mxu0 0
    %650 = vmatprep.mubr.bf16.mxu0 0
    %651 = vmatmul.mubr.bf16.gmra.mxu0 %v616
    %v652 = vpop.f32.mrf.mxu0
    %v653 = vadd.f32 %v610, %v652
    %v654 = vpop.f32.mrf.mxu0
    %v655 = vpop.f32.mrf.mxu0
    %v656 = vpop.f32.mrf.mxu0
    %657 = vdwg.mxu0
    %v658 = vadd.f32 %v653, %v152
    %v659 = vtanh.pop %v658
    %660 = vmatprep.subr.bf16.mxu0 0
    %661 = vmatpush1.bf16.msra.mxu0 0
    %662 = vmatprep.subr.bf16.mxu0 0
    %663 = vmatpush1.bf16.msra.mxu0 0
    %664 = vmatprep.subr.bf16.mxu0 0
    %665 = vmatpush1.bf16.msra.mxu0 0
    %666 = vmatprep.subr.bf16.mxu0 0
    %667 = vmatpush1.bf16.msra.mxu0 0
    %668 = vmatprep.subr.bf16.mxu0 0
    %669 = vmatpush1.bf16.msra.mxu0 0
    %670 = vmatprep.subr.bf16.mxu0 0
    %671 = vmatpush1.bf16.msra.mxu0 0
    %672 = vmatprep.subr.bf16.mxu0 0
    %673 = vmatpush1.bf16.msra.mxu0 %v133
    %674 = vmatprep.subr.bf16.mxu0 0
    %675 = vmatpush1.bf16.msra.mxu0 %v132
    %676 = vmatprep.subr.bf16.mxu0 0
    %677 = vmatpush2.bf16.msra.mxu0 0
    %678 = vmatprep.subr.bf16.mxu0 0
    %679 = vmatpush2.bf16.msra.mxu0 0
    %680 = vmatprep.subr.bf16.mxu0 0
    %681 = vmatpush2.bf16.msra.mxu0 0
    %682 = vmatprep.subr.bf16.mxu0 0
    %683 = vmatpush2.bf16.msra.mxu0 0
    %684 = vmatprep.subr.bf16.mxu0 0
    %685 = vmatpush2.bf16.msra.mxu0 0
    %686 = vmatprep.subr.bf16.mxu0 0
    %687 = vmatpush2.bf16.msra.mxu0 0
    %688 = vmatprep.subr.bf16.mxu0 0
    %689 = vmatpush2.bf16.msra.mxu0 0
    %690 = vmatprep.subr.bf16.mxu0 0
    %691 = vmatpush2.bf16.msra.mxu0 0
    %692 = vmatprep.mubr.bf16.mxu0 0
    %693 = vmatmul.mubr.bf16.gmra.mxu0 %v616
    %v694 = vpop.f32.mrf.mxu0
    %v695 = vadd.f32 0.0, %v694
    %v696 = vpop.f32.mrf.mxu0
    %v697 = vpop.f32.mrf.mxu0
    %v698 = vpop.f32.mrf.mxu0
    %699 = vdwg.mxu0
    %v700 = vadd.f32 %v230, %v695
    %v701 = vtanh.pop %v700
    %v702 = vpack.c.bf16 %v701, %v701
    %v703 = vpack.c.bf16 %v659, %v659
    %v705 = vsel %vm48, %v703, 0
    %707 = vmatprep.subr.bf16.mxu0 0
    %708 = vmatpush1.bf16.msra.mxu0 0
    %709 = vmatprep.subr.bf16.mxu0 0
    %710 = vmatpush1.bf16.msra.mxu0 0
    %711 = vmatprep.subr.bf16.mxu0 0
    %712 = vmatpush1.bf16.msra.mxu0 0
    %713 = vmatprep.subr.bf16.mxu0 0
    %714 = vmatpush1.bf16.msra.mxu0 0
    %715 = vmatprep.subr.bf16.mxu0 0
    %716 = vmatpush1.bf16.msra.mxu0 0
    %717 = vmatprep.subr.bf16.mxu0 0
    %718 = vmatpush1.bf16.msra.mxu0 0
    %719 = vmatprep.subr.bf16.mxu0 0
    %720 = vmatpush1.bf16.msra.mxu0 %v146
    %721 = vmatprep.subr.bf16.mxu0 0
    %722 = vmatpush1.bf16.msra.mxu0 %v145
    %723 = vmatprep.subr.bf16.mxu0 0
    %724 = vmatpush2.bf16.msra.mxu0 0
    %725 = vmatprep.subr.bf16.mxu0 0
    %726 = vmatpush2.bf16.msra.mxu0 0
    %727 = vmatprep.subr.bf16.mxu0 0
    %728 = vmatpush2.bf16.msra.mxu0 0
    %729 = vmatprep.subr.bf16.mxu0 0
    %730 = vmatpush2.bf16.msra.mxu0 0
    %731 = vmatprep.subr.bf16.mxu0 0
    %732 = vmatpush2.bf16.msra.mxu0 0
    %733 = vmatprep.subr.bf16.mxu0 0
    %734 = vmatpush2.bf16.msra.mxu0 0
    %735 = vmatprep.subr.bf16.mxu0 0
    %736 = vmatpush2.bf16.msra.mxu0 0
    %737 = vmatprep.subr.bf16.mxu0 0
    %738 = vmatpush2.bf16.msra.mxu0 0
    %739 = vmatprep.mubr.bf16.mxu0 0
    %740 = vmatmul.mubr.bf16.gmra.mxu0 %v705
    %v741 = vpop.f32.mrf.mxu0
    %v742 = vadd.f32 0.0, %v741
    %v743 = vpop.f32.mrf.mxu0
    %v744 = vpop.f32.mrf.mxu0
    %v745 = vpop.f32.mrf.mxu0
    %746 = vdwg.mxu0
    %v748 = vsel %vm48, %v702, 0
    %750 = vmatprep.subr.bf16.mxu0 0
    %751 = vmatpush1.bf16.msra.mxu0 0
    %752 = vmatprep.subr.bf16.mxu0 0
    %753 = vmatpush1.bf16.msra.mxu0 0
    %754 = vmatprep.subr.bf16.mxu0 0
    %755 = vmatpush1.bf16.msra.mxu0 0
    %756 = vmatprep.subr.bf16.mxu0 0
    %757 = vmatpush1.bf16.msra.mxu0 0
    %758 = vmatprep.subr.bf16.mxu0 0
    %759 = vmatpush1.bf16.msra.mxu0 0
    %760 = vmatprep.subr.bf16.mxu0 0
    %761 = vmatpush1.bf16.msra.mxu0 0
    %762 = vmatprep.subr.bf16.mxu0 0
    %763 = vmatpush1.bf16.msra.mxu0 %v144
    %764 = vmatprep.subr.bf16.mxu0 0
    %765 = vmatpush1.bf16.msra.mxu0 %v143
    %766 = vmatprep.subr.bf16.mxu0 0
    %767 = vmatpush2.bf16.msra.mxu0 0
    %768 = vmatprep.subr.bf16.mxu0 0
    %769 = vmatpush2.bf16.msra.mxu0 0
    %770 = vmatprep.subr.bf16.mxu0 0
    %771 = vmatpush2.bf16.msra.mxu0 0
    %772 = vmatprep.subr.bf16.mxu0 0
    %773 = vmatpush2.bf16.msra.mxu0 0
    %774 = vmatprep.subr.bf16.mxu0 0
    %775 = vmatpush2.bf16.msra.mxu0 0
    %776 = vmatprep.subr.bf16.mxu0 0
    %777 = vmatpush2.bf16.msra.mxu0 0
    %778 = vmatprep.subr.bf16.mxu0 0
    %779 = vmatpush2.bf16.msra.mxu0 0
    %780 = vmatprep.subr.bf16.mxu0 0
    %781 = vmatpush2.bf16.msra.mxu0 0
    %782 = vmatprep.mubr.bf16.mxu0 0
    %783 = vmatmul.mubr.bf16.gmra.mxu0 %v748
    %v784 = vpop.f32.mrf.mxu0
    %v785 = vadd.f32 %v742, %v784
    %v786 = vpop.f32.mrf.mxu0
    %v787 = vpop.f32.mrf.mxu0
    %v788 = vpop.f32.mrf.mxu0
    %789 = vdwg.mxu0
    %v790 = vadd.f32 %v785, %v152
    %v791 = vtanh.pop %v790
    %792 = vmatprep.subr.bf16.mxu0 0
    %793 = vmatpush1.bf16.msra.mxu0 0
    %794 = vmatprep.subr.bf16.mxu0 0
    %795 = vmatpush1.bf16.msra.mxu0 0
    %796 = vmatprep.subr.bf16.mxu0 0
    %797 = vmatpush1.bf16.msra.mxu0 0
    %798 = vmatprep.subr.bf16.mxu0 0
    %799 = vmatpush1.bf16.msra.mxu0 0
    %800 = vmatprep.subr.bf16.mxu0 0
    %801 = vmatpush1.bf16.msra.mxu0 0
    %802 = vmatprep.subr.bf16.mxu0 0
    %803 = vmatpush1.bf16.msra.mxu0 0
    %804 = vmatprep.subr.bf16.mxu0 0
    %805 = vmatpush1.bf16.msra.mxu0 %v133
    %806 = vmatprep.subr.bf16.mxu0 0
    %807 = vmatpush1.bf16.msra.mxu0 %v132
    %808 = vmatprep.subr.bf16.mxu0 0
    %809 = vmatpush2.bf16.msra.mxu0 0
    %810 = vmatprep.subr.bf16.mxu0 0
    %811 = vmatpush2.bf16.msra.mxu0 0
    %812 = vmatprep.subr.bf16.mxu0 0
    %813 = vmatpush2.bf16.msra.mxu0 0
    %814 = vmatprep.subr.bf16.mxu0 0
    %815 = vmatpush2.bf16.msra.mxu0 0
    %816 = vmatprep.subr.bf16.mxu0 0
    %817 = vmatpush2.bf16.msra.mxu0 0
    %818 = vmatprep.subr.bf16.mxu0 0
    %819 = vmatpush2.bf16.msra.mxu0 0
    %820 = vmatprep.subr.bf16.mxu0 0
    %821 = vmatpush2.bf16.msra.mxu0 0
    %822 = vmatprep.subr.bf16.mxu0 0
    %823 = vmatpush2.bf16.msra.mxu0 0
    %824 = vmatprep.mubr.bf16.mxu0 0
    %825 = vmatmul.mubr.bf16.gmra.mxu0 %v748
    %v826 = vpop.f32.mrf.mxu0
    %v827 = vadd.f32 0.0, %v826
    %v828 = vpop.f32.mrf.mxu0
    %v829 = vpop.f32.mrf.mxu0
    %v830 = vpop.f32.mrf.mxu0
    %831 = vdwg.mxu0
    %v832 = vadd.f32 %v235, %v827
    %v833 = vtanh.pop %v832
    %v834 = vpack.c.bf16 %v833, %v833
    %v835 = vpack.c.bf16 %v791, %v791
    %v837 = vsel %vm48, %v835, 0
    %839 = vmatprep.subr.bf16.mxu0 0
    %840 = vmatpush1.bf16.msra.mxu0 0
    %841 = vmatprep.subr.bf16.mxu0 0
    %842 = vmatpush1.bf16.msra.mxu0 0
    %843 = vmatprep.subr.bf16.mxu0 0
    %844 = vmatpush1.bf16.msra.mxu0 0
    %845 = vmatprep.subr.bf16.mxu0 0
    %846 = vmatpush1.bf16.msra.mxu0 0
    %847 = vmatprep.subr.bf16.mxu0 0
    %848 = vmatpush1.bf16.msra.mxu0 0
    %849 = vmatprep.subr.bf16.mxu0 0
    %850 = vmatpush1.bf16.msra.mxu0 0
    %851 = vmatprep.subr.bf16.mxu0 0
    %852 = vmatpush1.bf16.msra.mxu0 %v146
    %853 = vmatprep.subr.bf16.mxu0 0
    %854 = vmatpush1.bf16.msra.mxu0 %v145
    %855 = vmatprep.subr.bf16.mxu0 0
    %856 = vmatpush2.bf16.msra.mxu0 0
    %857 = vmatprep.subr.bf16.mxu0 0
    %858 = vmatpush2.bf16.msra.mxu0 0
    %859 = vmatprep.subr.bf16.mxu0 0
    %860 = vmatpush2.bf16.msra.mxu0 0
    %861 = vmatprep.subr.bf16.mxu0 0
    %862 = vmatpush2.bf16.msra.mxu0 0
    %863 = vmatprep.subr.bf16.mxu0 0
    %864 = vmatpush2.bf16.msra.mxu0 0
    %865 = vmatprep.subr.bf16.mxu0 0
    %866 = vmatpush2.bf16.msra.mxu0 0
    %867 = vmatprep.subr.bf16.mxu0 0
    %868 = vmatpush2.bf16.msra.mxu0 0
    %869 = vmatprep.subr.bf16.mxu0 0
    %870 = vmatpush2.bf16.msra.mxu0 0
    %871 = vmatprep.mubr.bf16.mxu0 0
    %872 = vmatmul.mubr.bf16.gmra.mxu0 %v837
    %v873 = vpop.f32.mrf.mxu0
    %v874 = vadd.f32 0.0, %v873
    %v875 = vpop.f32.mrf.mxu0
    %v876 = vpop.f32.mrf.mxu0
    %v877 = vpop.f32.mrf.mxu0
    %878 = vdwg.mxu0
    %v880 = vsel %vm48, %v834, 0
    %882 = vmatprep.subr.bf16.mxu0 0
    %883 = vmatpush1.bf16.msra.mxu0 0
    %884 = vmatprep.subr.bf16.mxu0 0
    %885 = vmatpush1.bf16.msra.mxu0 0
    %886 = vmatprep.subr.bf16.mxu0 0
    %887 = vmatpush1.bf16.msra.mxu0 0
    %888 = vmatprep.subr.bf16.mxu0 0
    %889 = vmatpush1.bf16.msra.mxu0 0
    %890 = vmatprep.subr.bf16.mxu0 0
    %891 = vmatpush1.bf16.msra.mxu0 0
    %892 = vmatprep.subr.bf16.mxu0 0
    %893 = vmatpush1.bf16.msra.mxu0 0
    %894 = vmatprep.subr.bf16.mxu0 0
    %895 = vmatpush1.bf16.msra.mxu0 %v144
    %896 = vmatprep.subr.bf16.mxu0 0
    %897 = vmatpush1.bf16.msra.mxu0 %v143
    %898 = vmatprep.subr.bf16.mxu0 0
    %899 = vmatpush2.bf16.msra.mxu0 0
    %900 = vmatprep.subr.bf16.mxu0 0
    %901 = vmatpush2.bf16.msra.mxu0 0
    %902 = vmatprep.subr.bf16.mxu0 0
    %903 = vmatpush2.bf16.msra.mxu0 0
    %904 = vmatprep.subr.bf16.mxu0 0
    %905 = vmatpush2.bf16.msra.mxu0 0
    %906 = vmatprep.subr.bf16.mxu0 0
    %907 = vmatpush2.bf16.msra.mxu0 0
    %908 = vmatprep.subr.bf16.mxu0 0
    %909 = vmatpush2.bf16.msra.mxu0 0
    %910 = vmatprep.subr.bf16.mxu0 0
    %911 = vmatpush2.bf16.msra.mxu0 0
    %912 = vmatprep.subr.bf16.mxu0 0
    %913 = vmatpush2.bf16.msra.mxu0 0
    %914 = vmatprep.mubr.bf16.mxu0 0
    %915 = vmatmul.mubr.bf16.gmra.mxu0 %v880
    %v916 = vpop.f32.mrf.mxu0
    %v917 = vadd.f32 %v874, %v916
    %v918 = vpop.f32.mrf.mxu0
    %v919 = vpop.f32.mrf.mxu0
    %v920 = vpop.f32.mrf.mxu0
    %921 = vdwg.mxu0
    %v922 = vadd.f32 %v917, %v152
    %v923 = vtanh.pop %v922
    %924 = vmatprep.subr.bf16.mxu0 0
    %925 = vmatpush1.bf16.msra.mxu0 0
    %926 = vmatprep.subr.bf16.mxu0 0
    %927 = vmatpush1.bf16.msra.mxu0 0
    %928 = vmatprep.subr.bf16.mxu0 0
    %929 = vmatpush1.bf16.msra.mxu0 0
    %930 = vmatprep.subr.bf16.mxu0 0
    %931 = vmatpush1.bf16.msra.mxu0 0
    %932 = vmatprep.subr.bf16.mxu0 0
    %933 = vmatpush1.bf16.msra.mxu0 0
    %934 = vmatprep.subr.bf16.mxu0 0
    %935 = vmatpush1.bf16.msra.mxu0 0
    %936 = vmatprep.subr.bf16.mxu0 0
    %937 = vmatpush1.bf16.msra.mxu0 %v133
    %938 = vmatprep.subr.bf16.mxu0 0
    %939 = vmatpush1.bf16.msra.mxu0 %v132
    %940 = vmatprep.subr.bf16.mxu0 0
    %941 = vmatpush2.bf16.msra.mxu0 0
    %942 = vmatprep.subr.bf16.mxu0 0
    %943 = vmatpush2.bf16.msra.mxu0 0
    %944 = vmatprep.subr.bf16.mxu0 0
    %945 = vmatpush2.bf16.msra.mxu0 0
    %946 = vmatprep.subr.bf16.mxu0 0
    %947 = vmatpush2.bf16.msra.mxu0 0
    %948 = vmatprep.subr.bf16.mxu0 0
    %949 = vmatpush2.bf16.msra.mxu0 0
    %950 = vmatprep.subr.bf16.mxu0 0
    %951 = vmatpush2.bf16.msra.mxu0 0
    %952 = vmatprep.subr.bf16.mxu0 0
    %953 = vmatpush2.bf16.msra.mxu0 0
    %954 = vmatprep.subr.bf16.mxu0 0
    %955 = vmatpush2.bf16.msra.mxu0 0
    %956 = vmatprep.mubr.bf16.mxu0 0
    %957 = vmatmul.mubr.bf16.gmra.mxu0 %v880
    %v958 = vpop.f32.mrf.mxu0
    %v959 = vadd.f32 0.0, %v958
    %v960 = vpop.f32.mrf.mxu0
    %v961 = vpop.f32.mrf.mxu0
    %v962 = vpop.f32.mrf.mxu0
    %963 = vdwg.mxu0
    %v964 = vadd.f32 %v238, %v959
    %v965 = vtanh.pop %v964
    %v966 = vpack.c.bf16 %v965, %v965
    %v967 = vpack.c.bf16 %v923, %v923
    %v969 = vsel %vm48, %v967, 0
    %971 = vmatprep.subr.bf16.mxu0 0
    %972 = vmatpush1.bf16.msra.mxu0 0
    %973 = vmatprep.subr.bf16.mxu0 0
    %974 = vmatpush1.bf16.msra.mxu0 0
    %975 = vmatprep.subr.bf16.mxu0 0
    %976 = vmatpush1.bf16.msra.mxu0 0
    %977 = vmatprep.subr.bf16.mxu0 0
    %978 = vmatpush1.bf16.msra.mxu0 0
    %979 = vmatprep.subr.bf16.mxu0 0
    %980 = vmatpush1.bf16.msra.mxu0 0
    %981 = vmatprep.subr.bf16.mxu0 0
    %982 = vmatpush1.bf16.msra.mxu0 0
    %983 = vmatprep.subr.bf16.mxu0 0
    %984 = vmatpush1.bf16.msra.mxu0 %v146
    %985 = vmatprep.subr.bf16.mxu0 0
    %986 = vmatpush1.bf16.msra.mxu0 %v145
    %987 = vmatprep.subr.bf16.mxu0 0
    %988 = vmatpush2.bf16.msra.mxu0 0
    %989 = vmatprep.subr.bf16.mxu0 0
    %990 = vmatpush2.bf16.msra.mxu0 0
    %991 = vmatprep.subr.bf16.mxu0 0
    %992 = vmatpush2.bf16.msra.mxu0 0
    %993 = vmatprep.subr.bf16.mxu0 0
    %994 = vmatpush2.bf16.msra.mxu0 0
    %995 = vmatprep.subr.bf16.mxu0 0
    %996 = vmatpush2.bf16.msra.mxu0 0
    %997 = vmatprep.subr.bf16.mxu0 0
    %998 = vmatpush2.bf16.msra.mxu0 0
    %999 = vmatprep.subr.bf16.mxu0 0
    %1000 = vmatpush2.bf16.msra.mxu0 0
    %1001 = vmatprep.subr.bf16.mxu0 0
    %1002 = vmatpush2.bf16.msra.mxu0 0
    %1003 = vmatprep.mubr.bf16.mxu0 0
    %1004 = vmatmul.mubr.bf16.gmra.mxu0 %v969
    %v1005 = vpop.f32.mrf.mxu0
    %v1006 = vadd.f32 0.0, %v1005
    %v1007 = vpop.f32.mrf.mxu0
    %v1008 = vpop.f32.mrf.mxu0
    %v1009 = vpop.f32.mrf.mxu0
    %1010 = vdwg.mxu0
    %v1012 = vsel %vm48, %v966, 0
    %1014 = vmatprep.subr.bf16.mxu0 0
    %1015 = vmatpush1.bf16.msra.mxu0 0
    %1016 = vmatprep.subr.bf16.mxu0 0
    %1017 = vmatpush1.bf16.msra.mxu0 0
    %1018 = vmatprep.subr.bf16.mxu0 0
    %1019 = vmatpush1.bf16.msra.mxu0 0
    %1020 = vmatprep.subr.bf16.mxu0 0
    %1021 = vmatpush1.bf16.msra.mxu0 0
    %1022 = vmatprep.subr.bf16.mxu0 0
    %1023 = vmatpush1.bf16.msra.mxu0 0
    %1024 = vmatprep.subr.bf16.mxu0 0
    %1025 = vmatpush1.bf16.msra.mxu0 0
    %1026 = vmatprep.subr.bf16.mxu0 0
    %1027 = vmatpush1.bf16.msra.mxu0 %v144
    %1028 = vmatprep.subr.bf16.mxu0 0
    %1029 = vmatpush1.bf16.msra.mxu0 %v143
    %1030 = vmatprep.subr.bf16.mxu0 0
    %1031 = vmatpush2.bf16.msra.mxu0 0
    %1032 = vmatprep.subr.bf16.mxu0 0
    %1033 = vmatpush2.bf16.msra.mxu0 0
    %1034 = vmatprep.subr.bf16.mxu0 0
    %1035 = vmatpush2.bf16.msra.mxu0 0
    %1036 = vmatprep.subr.bf16.mxu0 0
    %1037 = vmatpush2.bf16.msra.mxu0 0
    %1038 = vmatprep.subr.bf16.mxu0 0
    %1039 = vmatpush2.bf16.msra.mxu0 0
    %1040 = vmatprep.subr.bf16.mxu0 0
    %1041 = vmatpush2.bf16.msra.mxu0 0
    %1042 = vmatprep.subr.bf16.mxu0 0
    %1043 = vmatpush2.bf16.msra.mxu0 0
    %1044 = vmatprep.subr.bf16.mxu0 0
    %1045 = vmatpush2.bf16.msra.mxu0 0
    %1046 = vmatprep.mubr.bf16.mxu0 0
    %1047 = vmatmul.mubr.bf16.gmra.mxu0 %v1012
    %v1048 = vpop.f32.mrf.mxu0
    %v1049 = vadd.f32 %v1006, %v1048
    %v1050 = vpop.f32.mrf.mxu0
    %v1051 = vpop.f32.mrf.mxu0
    %v1052 = vpop.f32.mrf.mxu0
    %1053 = vdwg.mxu0
    %v1054 = vadd.f32 %v1049, %v152
    %v1055 = vtanh.pop %v1054
    %1056 = vmatprep.subr.bf16.mxu0 0
    %1057 = vmatpush1.bf16.msra.mxu0 0
    %1058 = vmatprep.subr.bf16.mxu0 0
    %1059 = vmatpush1.bf16.msra.mxu0 0
    %1060 = vmatprep.subr.bf16.mxu0 0
    %1061 = vmatpush1.bf16.msra.mxu0 0
    %1062 = vmatprep.subr.bf16.mxu0 0
    %1063 = vmatpush1.bf16.msra.mxu0 0
    %1064 = vmatprep.subr.bf16.mxu0 0
    %1065 = vmatpush1.bf16.msra.mxu0 0
    %1066 = vmatprep.subr.bf16.mxu0 0
    %1067 = vmatpush1.bf16.msra.mxu0 0
    %1068 = vmatprep.subr.bf16.mxu0 0
    %1069 = vmatpush1.bf16.msra.mxu0 %v133
    %1070 = vmatprep.subr.bf16.mxu0 0
    %1071 = vmatpush1.bf16.msra.mxu0 %v132
    %1072 = vmatprep.subr.bf16.mxu0 0
    %1073 = vmatpush2.bf16.msra.mxu0 0
    %1074 = vmatprep.subr.bf16.mxu0 0
    %1075 = vmatpush2.bf16.msra.mxu0 0
    %1076 = vmatprep.subr.bf16.mxu0 0
    %1077 = vmatpush2.bf16.msra.mxu0 0
    %1078 = vmatprep.subr.bf16.mxu0 0
    %1079 = vmatpush2.bf16.msra.mxu0 0
    %1080 = vmatprep.subr.bf16.mxu0 0
    %1081 = vmatpush2.bf16.msra.mxu0 0
    %1082 = vmatprep.subr.bf16.mxu0 0
    %1083 = vmatpush2.bf16.msra.mxu0 0
    %1084 = vmatprep.subr.bf16.mxu0 0
    %1085 = vmatpush2.bf16.msra.mxu0 0
    %1086 = vmatprep.subr.bf16.mxu0 0
    %1087 = vmatpush2.bf16.msra.mxu0 0
    %1088 = vmatprep.mubr.bf16.mxu0 0
    %1089 = vmatmul.mubr.bf16.gmra.mxu0 %v1012
    %v1090 = vpop.f32.mrf.mxu0
    %v1091 = vadd.f32 0.0, %v1090
    %v1092 = vpop.f32.mrf.mxu0
    %v1093 = vpop.f32.mrf.mxu0
    %v1094 = vpop.f32.mrf.mxu0
    %1095 = vdwg.mxu0
    %v1096 = vadd.f32 %v243, %v1091
    %v1097 = vtanh.pop %v1096
    %v1098 = vpack.c.bf16 %v1097, %v1097
    %v1099 = vpack.c.bf16 %v1055, %v1055
    %v1101 = vsel %vm48, %v1099, 0
    %1103 = vmatprep.subr.bf16.mxu0 0
    %1104 = vmatpush1.bf16.msra.mxu0 0
    %1105 = vmatprep.subr.bf16.mxu0 0
    %1106 = vmatpush1.bf16.msra.mxu0 0
    %1107 = vmatprep.subr.bf16.mxu0 0
    %1108 = vmatpush1.bf16.msra.mxu0 0
    %1109 = vmatprep.subr.bf16.mxu0 0
    %1110 = vmatpush1.bf16.msra.mxu0 0
    %1111 = vmatprep.subr.bf16.mxu0 0
    %1112 = vmatpush1.bf16.msra.mxu0 0
    %1113 = vmatprep.subr.bf16.mxu0 0
    %1114 = vmatpush1.bf16.msra.mxu0 0
    %1115 = vmatprep.subr.bf16.mxu0 0
    %1116 = vmatpush1.bf16.msra.mxu0 %v146
    %1117 = vmatprep.subr.bf16.mxu0 0
    %1118 = vmatpush1.bf16.msra.mxu0 %v145
    %1119 = vmatprep.subr.bf16.mxu0 0
    %1120 = vmatpush2.bf16.msra.mxu0 0
    %1121 = vmatprep.subr.bf16.mxu0 0
    %1122 = vmatpush2.bf16.msra.mxu0 0
    %1123 = vmatprep.subr.bf16.mxu0 0
    %1124 = vmatpush2.bf16.msra.mxu0 0
    %1125 = vmatprep.subr.bf16.mxu0 0
    %1126 = vmatpush2.bf16.msra.mxu0 0
    %1127 = vmatprep.subr.bf16.mxu0 0
    %1128 = vmatpush2.bf16.msra.mxu0 0
    %1129 = vmatprep.subr.bf16.mxu0 0
    %1130 = vmatpush2.bf16.msra.mxu0 0
    %1131 = vmatprep.subr.bf16.mxu0 0
    %1132 = vmatpush2.bf16.msra.mxu0 0
    %1133 = vmatprep.subr.bf16.mxu0 0
    %1134 = vmatpush2.bf16.msra.mxu0 0
    %1135 = vmatprep.mubr.bf16.mxu0 0
    %1136 = vmatmul.mubr.bf16.gmra.mxu0 %v1101
    %v1137 = vpop.f32.mrf.mxu0
    %v1138 = vadd.f32 0.0, %v1137
    %v1139 = vpop.f32.mrf.mxu0
    %v1140 = vpop.f32.mrf.mxu0
    %v1141 = vpop.f32.mrf.mxu0
    %1142 = vdwg.mxu0
    %v1144 = vsel %vm48, %v1098, 0
    %1146 = vmatprep.subr.bf16.mxu0 0
    %1147 = vmatpush1.bf16.msra.mxu0 0
    %1148 = vmatprep.subr.bf16.mxu0 0
    %1149 = vmatpush1.bf16.msra.mxu0 0
    %1150 = vmatprep.subr.bf16.mxu0 0
    %1151 = vmatpush1.bf16.msra.mxu0 0
    %1152 = vmatprep.subr.bf16.mxu0 0
    %1153 = vmatpush1.bf16.msra.mxu0 0
    %1154 = vmatprep.subr.bf16.mxu0 0
    %1155 = vmatpush1.bf16.msra.mxu0 0
    %1156 = vmatprep.subr.bf16.mxu0 0
    %1157 = vmatpush1.bf16.msra.mxu0 0
    %1158 = vmatprep.subr.bf16.mxu0 0
    %1159 = vmatpush1.bf16.msra.mxu0 %v144
    %1160 = vmatprep.subr.bf16.mxu0 0
    %1161 = vmatpush1.bf16.msra.mxu0 %v143
    %1162 = vmatprep.subr.bf16.mxu0 0
    %1163 = vmatpush2.bf16.msra.mxu0 0
    %1164 = vmatprep.subr.bf16.mxu0 0
    %1165 = vmatpush2.bf16.msra.mxu0 0
    %1166 = vmatprep.subr.bf16.mxu0 0
    %1167 = vmatpush2.bf16.msra.mxu0 0
    %1168 = vmatprep.subr.bf16.mxu0 0
    %1169 = vmatpush2.bf16.msra.mxu0 0
    %1170 = vmatprep.subr.bf16.mxu0 0
    %1171 = vmatpush2.bf16.msra.mxu0 0
    %1172 = vmatprep.subr.bf16.mxu0 0
    %1173 = vmatpush2.bf16.msra.mxu0 0
    %1174 = vmatprep.subr.bf16.mxu0 0
    %1175 = vmatpush2.bf16.msra.mxu0 0
    %1176 = vmatprep.subr.bf16.mxu0 0
    %1177 = vmatpush2.bf16.msra.mxu0 0
    %1178 = vmatprep.mubr.bf16.mxu0 0
    %1179 = vmatmul.mubr.bf16.gmra.mxu0 %v1144
    %v1180 = vpop.f32.mrf.mxu0
    %v1181 = vadd.f32 %v1138, %v1180
    %v1182 = vpop.f32.mrf.mxu0
    %v1183 = vpop.f32.mrf.mxu0
    %v1184 = vpop.f32.mrf.mxu0
    %1185 = vdwg.mxu0
    %v1186 = vadd.f32 %v1181, %v152
    %v1187 = vtanh.pop %v1186
    %1188 = vmatprep.subr.bf16.mxu0 0
    %1189 = vmatpush1.bf16.msra.mxu0 0
    %1190 = vmatprep.subr.bf16.mxu0 0
    %1191 = vmatpush1.bf16.msra.mxu0 0
    %1192 = vmatprep.subr.bf16.mxu0 0
    %1193 = vmatpush1.bf16.msra.mxu0 0
    %1194 = vmatprep.subr.bf16.mxu0 0
    %1195 = vmatpush1.bf16.msra.mxu0 0
    %1196 = vmatprep.subr.bf16.mxu0 0
    %1197 = vmatpush1.bf16.msra.mxu0 0
    %1198 = vmatprep.subr.bf16.mxu0 0
    %1199 = vmatpush1.bf16.msra.mxu0 0
    %1200 = vmatprep.subr.bf16.mxu0 0
    %1201 = vmatpush1.bf16.msra.mxu0 %v133
    %1202 = vmatprep.subr.bf16.mxu0 0
    %1203 = vmatpush1.bf16.msra.mxu0 %v132
    %1204 = vmatprep.subr.bf16.mxu0 0
    %1205 = vmatpush2.bf16.msra.mxu0 0
    %1206 = vmatprep.subr.bf16.mxu0 0
    %1207 = vmatpush2.bf16.msra.mxu0 0
    %1208 = vmatprep.subr.bf16.mxu0 0
    %1209 = vmatpush2.bf16.msra.mxu0 0
    %1210 = vmatprep.subr.bf16.mxu0 0
    %1211 = vmatpush2.bf16.msra.mxu0 0
    %1212 = vmatprep.subr.bf16.mxu0 0
    %1213 = vmatpush2.bf16.msra.mxu0 0
    %1214 = vmatprep.subr.bf16.mxu0 0
    %1215 = vmatpush2.bf16.msra.mxu0 0
    %1216 = vmatprep.subr.bf16.mxu0 0
    %1217 = vmatpush2.bf16.msra.mxu0 0
    %1218 = vmatprep.subr.bf16.mxu0 0
    %1219 = vmatpush2.bf16.msra.mxu0 0
    %1220 = vmatprep.mubr.bf16.mxu0 0
    %1221 = vmatmul.mubr.bf16.gmra.mxu0 %v1144
    %v1222 = vpop.f32.mrf.mxu0
    %v1223 = vadd.f32 0.0, %v1222
    %v1224 = vpop.f32.mrf.mxu0
    %v1225 = vpop.f32.mrf.mxu0
    %v1226 = vpop.f32.mrf.mxu0
    %1227 = vdwg.mxu0
    %v1228 = vadd.f32 %v246, %v1223
    %v1229 = vtanh.pop %v1228
    %v1230 = vpack.c.bf16 %v1229, %v1229
    %v1231 = vpack.c.bf16 %v1187, %v1187
    %v1233 = vsel %vm48, %v1231, 0
    %1235 = vmatprep.subr.bf16.mxu0 0
    %1236 = vmatpush1.bf16.msra.mxu0 0
    %1237 = vmatprep.subr.bf16.mxu0 0
    %1238 = vmatpush1.bf16.msra.mxu0 0
    %1239 = vmatprep.subr.bf16.mxu0 0
    %1240 = vmatpush1.bf16.msra.mxu0 0
    %1241 = vmatprep.subr.bf16.mxu0 0
    %1242 = vmatpush1.bf16.msra.mxu0 0
    %1243 = vmatprep.subr.bf16.mxu0 0
    %1244 = vmatpush1.bf16.msra.mxu0 0
    %1245 = vmatprep.subr.bf16.mxu0 0
    %1246 = vmatpush1.bf16.msra.mxu0 0
    %1247 = vmatprep.subr.bf16.mxu0 0
    %1248 = vmatpush1.bf16.msra.mxu0 %v146
    %1249 = vmatprep.subr.bf16.mxu0 0
    %1250 = vmatpush1.bf16.msra.mxu0 %v145
    %1251 = vmatprep.subr.bf16.mxu0 0
    %1252 = vmatpush2.bf16.msra.mxu0 0
    %1253 = vmatprep.subr.bf16.mxu0 0
    %1254 = vmatpush2.bf16.msra.mxu0 0
    %1255 = vmatprep.subr.bf16.mxu0 0
    %1256 = vmatpush2.bf16.msra.mxu0 0
    %1257 = vmatprep.subr.bf16.mxu0 0
    %1258 = vmatpush2.bf16.msra.mxu0 0
    %1259 = vmatprep.subr.bf16.mxu0 0
    %1260 = vmatpush2.bf16.msra.mxu0 0
    %1261 = vmatprep.subr.bf16.mxu0 0
    %1262 = vmatpush2.bf16.msra.mxu0 0
    %1263 = vmatprep.subr.bf16.mxu0 0
    %1264 = vmatpush2.bf16.msra.mxu0 0
    %1265 = vmatprep.subr.bf16.mxu0 0
    %1266 = vmatpush2.bf16.msra.mxu0 0
    %1267 = vmatprep.mubr.bf16.mxu0 0
    %1268 = vmatmul.mubr.bf16.gmra.mxu0 %v1233
    %v1269 = vpop.f32.mrf.mxu0
    %v1270 = vadd.f32 0.0, %v1269
    %v1271 = vpop.f32.mrf.mxu0
    %v1272 = vpop.f32.mrf.mxu0
    %v1273 = vpop.f32.mrf.mxu0
    %1274 = vdwg.mxu0
    %v1276 = vsel %vm48, %v1230, 0
    %1278 = vmatprep.subr.bf16.mxu0 0
    %1279 = vmatpush1.bf16.msra.mxu0 0
    %1280 = vmatprep.subr.bf16.mxu0 0
    %1281 = vmatpush1.bf16.msra.mxu0 0
    %1282 = vmatprep.subr.bf16.mxu0 0
    %1283 = vmatpush1.bf16.msra.mxu0 0
    %1284 = vmatprep.subr.bf16.mxu0 0
    %1285 = vmatpush1.bf16.msra.mxu0 0
    %1286 = vmatprep.subr.bf16.mxu0 0
    %1287 = vmatpush1.bf16.msra.mxu0 0
    %1288 = vmatprep.subr.bf16.mxu0 0
    %1289 = vmatpush1.bf16.msra.mxu0 0
    %1290 = vmatprep.subr.bf16.mxu0 0
    %1291 = vmatpush1.bf16.msra.mxu0 %v144
    %1292 = vmatprep.subr.bf16.mxu0 0
    %1293 = vmatpush1.bf16.msra.mxu0 %v143
    %1294 = vmatprep.subr.bf16.mxu0 0
    %1295 = vmatpush2.bf16.msra.mxu0 0
    %1296 = vmatprep.subr.bf16.mxu0 0
    %1297 = vmatpush2.bf16.msra.mxu0 0
    %1298 = vmatprep.subr.bf16.mxu0 0
    %1299 = vmatpush2.bf16.msra.mxu0 0
    %1300 = vmatprep.subr.bf16.mxu0 0
    %1301 = vmatpush2.bf16.msra.mxu0 0
    %1302 = vmatprep.subr.bf16.mxu0 0
    %1303 = vmatpush2.bf16.msra.mxu0 0
    %1304 = vmatprep.subr.bf16.mxu0 0
    %1305 = vmatpush2.bf16.msra.mxu0 0
    %1306 = vmatprep.subr.bf16.mxu0 0
    %1307 = vmatpush2.bf16.msra.mxu0 0
    %1308 = vmatprep.subr.bf16.mxu0 0
    %1309 = vmatpush2.bf16.msra.mxu0 0
    %1310 = vmatprep.mubr.bf16.mxu0 0
    %1311 = vmatmul.mubr.bf16.gmra.mxu0 %v1276
    %v1312 = vpop.f32.mrf.mxu0
    %v1313 = vadd.f32 %v1270, %v1312
    %v1314 = vpop.f32.mrf.mxu0
    %v1315 = vpop.f32.mrf.mxu0
    %v1316 = vpop.f32.mrf.mxu0
    %1317 = vdwg.mxu0
    %v1318 = vadd.f32 %v1313, %v152
    %v1319 = vtanh.pop %v1318
    %1320 = vst.msk [vmem:[%s10] sm:$0xff] %vm48, %v1229
    %1321 = vst.msk [vmem:[%s256] sm:$0xff] %vm48, %v1319
    %v1322 = vpack.c.bf16 %v527, %v395
    %v1323 = vpack.c.bf16 %v791, %v659
    %v1324 = vpack.c.bf16 %v1055, %v923
    %v1325 = vpack.c.bf16 %v1319, %v1187
    %v1326 = vld [vmem:[%s7] sm:$0xff]
    %v1327 = vld [vmem:[%s7 + $0x8] sm:$0xff]
    %v1328 = vld [vmem:[%s7 + $0x10] sm:$0xff]
    %v1329 = vld [vmem:[%s7 + $0x18] sm:$0xff]
    %v1330 = vpack.c.bf16 %v1327, %v1326
    %v1331 = vpack.c.bf16 %v1329, %v1328
    %v1332 = vld [vmem:[%s8] sm:$0x1]
    %v1334 = vlaneseq
    %v1335 = vshrl.u32 %v1334, 7
    %v1336 = vsub.s32 0, %v1335
    %v1337 = vrot.slane %v1332, %v1336
    %v1340 = vsel %vm48, %v1322, 0
    %v1343 = vsel %vm48, %v1323, 0
    %v1346 = vsel %vm48, %v1324, 0
    %v1349 = vsel %vm48, %v1325, 0
    %1351 = vmatprep.subr.bf16.mxu0 0
    %1352 = vmatpush1.bf16.msra.mxu0 0
    %1353 = vmatprep.subr.bf16.mxu0 0
    %1354 = vmatpush1.bf16.msra.mxu0 0
    %1355 = vmatprep.subr.bf16.mxu0 0
    %1356 = vmatpush1.bf16.msra.mxu0 0
    %1357 = vmatprep.subr.bf16.mxu0 0
    %1358 = vmatpush1.bf16.msra.mxu0 0
    %1359 = vmatprep.subr.bf16.mxu0 0
    %1360 = vmatpush1.bf16.msra.mxu0 0
    %1361 = vmatprep.subr.bf16.mxu0 0
    %1362 = vmatpush1.bf16.msra.mxu0 0
    %1363 = vmatprep.subr.bf16.mxu0 0
    %1364 = vmatpush1.bf16.msra.mxu0 %v1331
    %1365 = vmatprep.subr.bf16.mxu0 0
    %1366 = vmatpush1.bf16.msra.mxu0 %v1330
    %1367 = vmatprep.subr.bf16.mxu0 0
    %1368 = vmatpush2.bf16.msra.mxu0 0
    %1369 = vmatprep.subr.bf16.mxu0 0
    %1370 = vmatpush2.bf16.msra.mxu0 0
    %1371 = vmatprep.subr.bf16.mxu0 0
    %1372 = vmatpush2.bf16.msra.mxu0 0
    %1373 = vmatprep.subr.bf16.mxu0 0
    %1374 = vmatpush2.bf16.msra.mxu0 0
    %1375 = vmatprep.subr.bf16.mxu0 0
    %1376 = vmatpush2.bf16.msra.mxu0 0
    %1377 = vmatprep.subr.bf16.mxu0 0
    %1378 = vmatpush2.bf16.msra.mxu0 0
    %1379 = vmatprep.subr.bf16.mxu0 0
    %1380 = vmatpush2.bf16.msra.mxu0 0
    %1381 = vmatprep.subr.bf16.mxu0 0
    %1382 = vmatpush2.bf16.msra.mxu0 0
    %1383 = vmatprep.mubr.bf16.mxu0 0
    %1384 = vmatmul.mubr.bf16.gmra.mxu0 %v1340
    %v1385 = vpop.f32.mrf.mxu0
    %v1386 = vadd.f32 %v1337, %v1385
    %v1387 = vpop.f32.mrf.mxu0
    %v1388 = vpop.f32.mrf.mxu0
    %v1389 = vadd.f32 %v1337, %v1388
    %v1390 = vpop.f32.mrf.mxu0
    %1391 = vmatprep.mubr.bf16.mxu0 0
    %1392 = vmatmul.mubr.bf16.gmra.mxu0 %v1343
    %v1393 = vpop.f32.mrf.mxu0
    %v1394 = vadd.f32 %v1337, %v1393
    %v1395 = vpop.f32.mrf.mxu0
    %v1396 = vpop.f32.mrf.mxu0
    %v1397 = vadd.f32 %v1337, %v1396
    %v1398 = vpop.f32.mrf.mxu0
    %1399 = vmatprep.mubr.bf16.mxu0 0
    %1400 = vmatmul.mubr.bf16.gmra.mxu0 %v1346
    %v1401 = vpop.f32.mrf.mxu0
    %v1402 = vadd.f32 %v1337, %v1401
    %v1403 = vpop.f32.mrf.mxu0
    %v1404 = vpop.f32.mrf.mxu0
    %v1405 = vadd.f32 %v1337, %v1404
    %v1406 = vpop.f32.mrf.mxu0
    %1407 = vmatprep.mubr.bf16.mxu0 0
    %1408 = vmatmul.mubr.bf16.gmra.mxu0 %v1349
    %v1409 = vpop.f32.mrf.mxu0
    %v1410 = vadd.f32 %v1337, %v1409
    %v1411 = vpop.f32.mrf.mxu0
    %v1412 = vpop.f32.mrf.mxu0
    %v1413 = vadd.f32 %v1337, %v1412
    %v1414 = vpop.f32.mrf.mxu0
    %1415 = vdwg.mxu0
    %1416 = vst [vmem:[%s9] sm:$0xff] %v1386
    %1417 = vst [vmem:[%s9 + $0x8] sm:$0xff] %v1389
    %1418 = vst [vmem:[%s9 + $0x10] sm:$0xff] %v1394
    %1419 = vst [vmem:[%s9 + $0x18] sm:$0xff] %v1397
    %1420 = vst [vmem:[%s9 + $0x20] sm:$0xff] %v1402
    %1421 = vst [vmem:[%s9 + $0x28] sm:$0xff] %v1405
    %1422 = vst [vmem:[%s9 + $0x30] sm:$0xff] %v1410
    %1423 = vst [vmem:[%s9 + $0x38] sm:$0xff] %v1413
    // Predicated region
    $region42: #{rnn_forward.1} parent=1 // pred_check
      _
    $region43: #{rnn_forward.1} parent=1 // pred_check_branch
      %1425 = sbr.rel (0) target = $region45
    $region44: #{rnn_forward.1} parent=1 // pred_region
      _
    $region45: #{rnn_forward.1} parent=1 // pred_fallthru
      _
    // Predicated region
    $region46: #{rnn_forward.1} parent=1 // pred_check
      _
    $region47: #{rnn_forward.1} parent=1 // pred_check_branch
      %1427 = sbr.rel (0) target = $region49
    $region48: #{rnn_forward.1} parent=1 // pred_region
      _
    $region49: #{rnn_forward.1} parent=1 // pred_fallthru
      _
    // Predicated region
    $region50: #{rnn_forward.1} parent=1 // pred_check
      _
    $region51: #{rnn_forward.1} parent=1 // pred_check_branch
      %1429 = sbr.rel (0) target = $region53
    $region52: #{rnn_forward.1} parent=1 // pred_region
      _
    $region53: #{rnn_forward.1} parent=1 // pred_fallthru
      _
    // Predicated region
    $region54: #{rnn_forward.1} parent=1 // pred_check
      _
    $region55: #{rnn_forward.1} parent=1 // pred_check_branch
      %1431 = sbr.rel (0) target = $region57
    $region56: #{rnn_forward.1} parent=1 // pred_region
      _
    $region57: #{rnn_forward.1} parent=1 // pred_fallthru
      _
    %1432 = vsyncpa [#allocation4], 1

</llo_original>
